<compile_context>
chip_gen: v6e
topology: v6e:2x2x1
jax: 0.10.0
libtpu: 0.0.40
codegen_flags: <defaults>
</compile_context>

<pallas_src>
import functools

import jax
import jax.numpy as jnp
from jax.experimental import pallas as pl
from jax.experimental.pallas import tpu as pltpu


LANE = 128


def _round_up(x, m):
    return ((x + m - 1) // m) * m


# ---------------------------------------------------------------------------
# in-kernel activations (EUP reciprocal instead of VALU divide)
# ---------------------------------------------------------------------------
def _sigmoid_k(x):
    return pl.reciprocal(1.0 + jnp.exp(-x), approx=True)


def _silu_k(x):
    return x * _sigmoid_k(x)


# ---------------------------------------------------------------------------
# kernel: processes B_tile graphs per grid step
# ---------------------------------------------------------------------------
def egcl_kernel(nf_ref, pos_ref, vcol_ref, vrow_ref, adj_ref, c_ref,
                w_hh_ref, w_d_ref, w_a_ref, w_e2_ref,
                w_ci_ref, w_c2_ref, w_n1_ref, w_n2_ref,
                out_h_ref, out_pos_ref, *, mxu_dtype):
    h = nf_ref[...]          # [BT, N, NFp]   (zero-padded features)
    p = pos_ref[...]         # [BT, N, PD]    (zero-padded coords)
    vcol = vcol_ref[...]     # [BT, N, 1]     valid_i
    vrow = vrow_ref[...]     # [BT, 1, N]     valid_j
    adj = adj_ref[...]       # [BT, N, N]
    Cc = c_ref[...]          # [BT, 1, 1]     1 / (sum(valid) - 1), precomputed

    BT, N, NFp = h.shape
    Hp = w_e2_ref.shape[0]
    M = BT * N * N

    def mm(a, b):
        # MXU matmul with f32 accumulation; operands optionally cast to bf16.
        return jnp.dot(a.astype(mxu_dtype), b.astype(mxu_dtype),
                       preferred_element_type=jnp.float32)

    # ---- pairwise squared distance via Gram matrix (no [N,N,3] tensor) -----
    gram = jnp.einsum('bnd,bmd->bnm', p, p,
                      preferred_element_type=jnp.float32)              # [BT,N,N]
    sq = jnp.sum(p * p, axis=-1)                                       # [BT,N]
    dist = jnp.maximum(sq[:, :, None] + sq[:, None, :] - 2.0 * gram, 0.0)

    # ---- edge MLP:  m_ij = SiLU(SiLU([h_i,h_j,d,a] @ W1) @ W2) -------------
    h2 = h.reshape(BT * N, NFp)
    hp = mm(h2, w_hh_ref[...])                                         # [BT*N, 2Hp]
    hi_p = hp[:, :Hp].reshape(BT, N, Hp)
    hj_p = hp[:, Hp:].reshape(BT, N, Hp)
    pre1 = (hi_p[:, :, None, :] + hj_p[:, None, :, :]
            + dist[..., None] * w_d_ref[...]
            + adj[..., None] * w_a_ref[...])                           # [BT,N,N,Hp]
    t1 = _silu_k(pre1).reshape(M, Hp)
    m = _silu_k(mm(t1, w_e2_ref[...]))                                 # [M, Hp]

    # ---- coordinate / inference projections (merged LHS=m matmul) ----------
    ci = mm(m, w_ci_ref[...])                                          # [M, Hp+128]
    c1 = _silu_k(ci[:, :Hp])
    e = _sigmoid_k(ci[:, Hp:Hp + 1])                                   # [M, 1] gate
    coord = mm(c1, w_c2_ref[...])                                      # [M, 1]
    coord2 = coord.reshape(BT, N, N)

    # ---- coordinate update (update_pos=True) --------------------------------
    # delta_i = sum_j w_ij (p_i - p_j) = rowsum(w)_i * p_i - (w @ p)_i
    vpair = vcol * vrow                                                # [BT,N,N]
    ii = jax.lax.broadcasted_iota(jnp.int32, (N, N), 0)
    jj = jax.lax.broadcasted_iota(jnp.int32, (N, N), 1)
    offdiag = (ii != jj).astype(jnp.float32)                           # zero i==j terms
    inv_norm = jax.lax.rsqrt(jnp.maximum(dist, 1e-20))                 # = 1/max(||.||,1e-10)
    w = coord2 * vpair * inv_norm * offdiag                            # [BT,N,N]
    wp = jnp.einsum('bij,bjd->bid', w, p,
                    preferred_element_type=jnp.float32)                # [BT,N,PD]
    delta = jnp.sum(w, axis=-1, keepdims=True) * p - wp
    new_pos = p + Cc * delta

    # ---- inference gate (infer=True) + message aggregation ------------------
    m = m * e                                                          # [M, Hp]
    msg = jnp.sum(m.reshape(BT, N, N, Hp) * adj[..., None], axis=2)    # [BT,N,Hp]

    # ---- node update: h += phi_h([h, m_i])  (merged vstack weight) ----------
    node_in = jnp.concatenate([h2, msg.reshape(BT * N, Hp)], axis=-1)  # [BT*N, NFp+Hp]
    n1 = _silu_k(mm(node_in, w_n1_ref[...]))
    dh = mm(n1, w_n2_ref[...])                                         # [BT*N, NFp]

    out_h_ref[...] = (h2 + dh).reshape(BT, N, NFp).astype(out_h_ref.dtype)
    out_pos_ref[...] = new_pos.astype(out_pos_ref.dtype)


# ---------------------------------------------------------------------------
# wrapper: padding, weight merging, BlockSpecs, grid
# ---------------------------------------------------------------------------
W_ORDER = ("w_hh", "w_d", "w_a", "w_e2", "w_ci", "w_c2", "w_n1", "w_n2")


def _prepare_weights(params, NF, H, NFp, Hp):
    """Zero-pad to lane-dense shapes and merge shared-LHS matmuls."""
    f32 = jnp.float32
    w_hh = (jnp.zeros((NFp, 2 * Hp), f32)
            .at[:NF, :H].set(params["w1_hi"])
            .at[:NF, Hp:Hp + H].set(params["w1_hj"]))
    w_d = jnp.zeros((1, Hp), f32).at[0, :H].set(params["w1_d"][0])
    w_a = jnp.zeros((1, Hp), f32).at[0, :H].set(params["w1_a"][0])
    w_e2 = jnp.zeros((Hp, Hp), f32).at[:H, :H].set(params["w_e2"])
    # merged coordinate-hidden | inference-gate weight (gate logit in col Hp)
    w_ci = (jnp.zeros((Hp, Hp + LANE), f32)
            .at[:H, :H].set(params["wc1"])
            .at[:H, Hp].set(params["wi"][:, 0]))
    w_c2 = jnp.zeros((Hp, 1), f32).at[:H, 0].set(params["wc2"][:, 0])
    # merged node-update weight for concat([h, msg])
    w_n1 = (jnp.zeros((NFp + Hp, Hp), f32)
            .at[:NF, :H].set(params["wn1_h"])
            .at[NFp:NFp + H, :H].set(params["wn1_m"]))
    w_n2 = jnp.zeros((Hp, NFp), f32).at[:H, :NF].set(params["wn2"])
    return dict(w_hh=w_hh, w_d=w_d, w_a=w_a, w_e2=w_e2,
                w_ci=w_ci, w_c2=w_c2, w_n1=w_n1, w_n2=w_n2)


def _default_b_tile(B):
    # Keep >=2 parallel grid steps when possible so v7x's two TensorCores both
    # get work; otherwise fold the whole batch into a single block.
    if B <= 1:
        return max(B, 1)
    if B % 2 == 0:
        return B // 2
    return 1


def egcl_forward(node_feat, pos, valid, adj, params, *,
                 b_tile=None, mxu_dtype=jnp.float32):
    B, N, NF = node_feat.shape
    H = params["w_e2"].shape[0]
    NFp = _round_up(NF, LANE)
    Hp = _round_up(H, LANE)
    PD = LANE                      # coordinate dim padded 3 -> 128 (lane-dense)

    if b_tile is None:
        b_tile = _default_b_tile(B)
    assert B % b_tile == 0, "batch must be divisible by b_tile"
    grid_b = B // b_tile

    # lane-dense, zero-padded inputs
    nf_p = jnp.pad(node_feat.astype(jnp.float32), ((0, 0), (0, 0), (0, NFp - NF)))
    pos_p = jnp.pad(pos.astype(jnp.float32), ((0, 0), (0, 0), (0, PD - pos.shape[-1])))
    vcol = valid.reshape(B, N, 1).astype(jnp.float32)
    vrow = valid.reshape(B, 1, N).astype(jnp.float32)
    adj_f = adj.astype(jnp.float32)
    # precomputed per-graph C = 1/(sum(valid)-1); guarded so a single-valid-node
    # graph does not produce inf/NaN (torch reference would return inf there).
    denom = jnp.sum(valid.astype(jnp.float32), axis=-1) - 1.0
    c_arr = (1.0 / jnp.maximum(denom, 1e-6)).reshape(B, 1, 1)

    W = _prepare_weights(params, NF, H, NFp, Hp)

    def data_spec(shape):
        nd = len(shape)
        return pl.BlockSpec((b_tile,) + tuple(shape[1:]),
                            lambda b, _nd=nd: (b,) + (0,) * (_nd - 1))

    def weight_spec(w):
        nd = w.ndim
        return pl.BlockSpec(w.shape, lambda b, _nd=nd: (0,) * _nd)

    data_args = [nf_p, pos_p, vcol, vrow, adj_f, c_arr]
    weight_args = [W[k] for k in W_ORDER]

    in_specs = ([data_spec(a.shape) for a in data_args]
                + [weight_spec(w) for w in weight_args])

    out_shape = (jax.ShapeDtypeStruct((B, N, NFp), jnp.float32),
                 jax.ShapeDtypeStruct((B, N, PD), jnp.float32))
    out_specs = [pl.BlockSpec((b_tile, N, NFp), lambda b: (b, 0, 0)),
                 pl.BlockSpec((b_tile, N, PD), lambda b: (b, 0, 0))]

    fn = pl.pallas_call(
        functools.partial(egcl_kernel, mxu_dtype=mxu_dtype),
        out_shape=out_shape,
        grid_spec=pltpu.PrefetchScalarGridSpec(
            num_scalar_prefetch=0,
            grid=(grid_b,),
            in_specs=in_specs,
            out_specs=out_specs),
        compiler_params=pltpu.CompilerParams(
            dimension_semantics=("parallel",)),
    )
    out_h_p, out_pos_p = fn(*data_args, *weight_args)
    # slice lane padding off
    return out_h_p[..., :NF], out_pos_p[..., :3]


# ---------------------------------------------------------------------------
# pure-JAX reference mirroring the PyTorch forward (infer=True, update_pos=True)
# ---------------------------------------------------------------------------
def _silu_ref(x):
    return x * (1.0 / (1.0 + jnp.exp(-x)))


def _sigmoid_ref(x):
    return 1.0 / (1.0 + jnp.exp(-x))


def egcl_reference(node_feat, pos, valid, adj, params):
    B, N, NF = node_feat.shape
    hi = jnp.broadcast_to(node_feat[:, :, None, :], (B, N, N, NF))
    hj = jnp.broadcast_to(node_feat[:, None, :, :], (B, N, N, NF))
    vec = pos[:, :, None, :] - pos[:, None, :, :]
    dist = jnp.sum(vec ** 2, axis=-1, keepdims=True)
    adj4 = adj[..., None]
    edge_in = jnp.concatenate([hi, hj, dist, adj4], axis=-1)
    W1 = jnp.concatenate(
        [params["w1_hi"], params["w1_hj"], params["w1_d"], params["w1_a"]], axis=0)
    m = _silu_ref(edge_in @ W1)
    m = _silu_ref(m @ params["w_e2"])
    norm = jnp.sqrt(jnp.sum(vec ** 2, axis=-1, keepdims=True))
    vec_n = vec / jnp.maximum(norm, 1e-10)
    vpair = (valid[:, :, None] * valid[:, None, :])[..., None]
    C = 1.0 / (valid.sum(-1) - 1.0)
    coord = _silu_ref(m @ params["wc1"]) @ params["wc2"]
    new_pos = pos + C[:, None, None] * jnp.sum(vec_n * coord * vpair, axis=2)
    e = _sigmoid_ref(m @ params["wi"])
    m = m * e
    msg = jnp.sum(m * adj4, axis=2)
    node_in = jnp.concatenate([node_feat, msg], axis=-1)
    Wn1 = jnp.concatenate([params["wn1_h"], params["wn1_m"]], axis=0)
    new_h = node_feat + _silu_ref(node_in @ Wn1) @ params["wn2"]
    return new_h, new_pos


def make_params(key, n_node_feat, hidden_dim):
    NF, H = n_node_feat, hidden_dim
    shapes = {
        "w1_hi": (NF, H), "w1_hj": (NF, H), "w1_d": (1, H), "w1_a": (1, H),
        "w_e2": (H, H),
        "wc1": (H, H), "wc2": (H, 1),
        "wi": (H, 1),
        "wn1_h": (NF, H), "wn1_m": (H, H), "wn2": (H, NF),
    }
    params = {}
    keys = jax.random.split(key, len(shapes))
    for k, (name, shp) in zip(keys, shapes.items()):
        fan_in = shp[0]
        params[name] = (jax.random.normal(k, shp, jnp.float32)
                        * (1.0 / jnp.sqrt(jnp.float32(fan_in))))
    return params


if __name__ == "__main__":
    key = jax.random.PRNGKey(0)
    B, N, NF, H = 2, 8, 8, 32
    k_nf, k_pos, k_adj, k_par = jax.random.split(key, 4)

    node_feat = jax.random.normal(k_nf, (B, N, NF), jnp.float32)
    pos = jax.random.normal(k_pos, (B, N, 3), jnp.float32)
    adj = (jax.random.uniform(k_adj, (B, N, N)) > 0.5).astype(jnp.float32)
    adj = adj * (1.0 - jnp.eye(N, dtype=jnp.float32))        # zero self-edges
    valid = jnp.ones((B, N), jnp.float32).at[1, N - 2:].set(0.0)  # padded atoms

    params = make_params(k_par, NF, H)

    out_h, out_pos = egcl_forward(node_feat, pos, valid, adj, params)
    out_h = jax.block_until_ready(out_h)
    out_pos = jax.block_until_ready(out_pos)

    ref_h, ref_pos = egcl_reference(node_feat, pos, valid, adj, params)
    assert jnp.allclose(out_h, ref_h, atol=2e-2, rtol=2e-2), "node_feat mismatch"
    assert jnp.allclose(out_pos, ref_pos, atol=2e-2, rtol=2e-2), "pos mismatch"

    print("KERNEL_OK")
</pallas_src>

<mosaic_0001>
module attributes {stable_mosaic.version = 11 : i64} {
  func.func @egcl_kernel(%arg0: i32, %arg1: memref<1x8x128xf32, #tpu.memory_space<vmem>>, %arg2: memref<1x8x128xf32, #tpu.memory_space<vmem>>, %arg3: memref<1x8x1xf32, #tpu.memory_space<vmem>>, %arg4: memref<1x1x8xf32, #tpu.memory_space<vmem>>, %arg5: memref<1x8x8xf32, #tpu.memory_space<vmem>>, %arg6: memref<1x1x1xf32, #tpu.memory_space<vmem>>, %arg7: memref<128x256xf32, #tpu.memory_space<vmem>>, %arg8: memref<1x128xf32, #tpu.memory_space<vmem>>, %arg9: memref<1x128xf32, #tpu.memory_space<vmem>>, %arg10: memref<128x128xf32, #tpu.memory_space<vmem>>, %arg11: memref<128x256xf32, #tpu.memory_space<vmem>>, %arg12: memref<128x1xf32, #tpu.memory_space<vmem>>, %arg13: memref<256x128xf32, #tpu.memory_space<vmem>>, %arg14: memref<128x128xf32, #tpu.memory_space<vmem>>, %arg15: memref<1x8x128xf32, #tpu.memory_space<vmem>>, %arg16: memref<1x8x128xf32, #tpu.memory_space<vmem>>) attributes {dimension_semantics = [#tpu.dimension_semantics<parallel>], iteration_bounds = array<i64: 2>, scalar_prefetch = 0 : i64, scratch_operands = 0 : i64, tpu.core_type = #tpu.core_type<tc>, window_params = [{transform_indices = @transform_0, window_bounds = array<i64: 1, 8, 128>}, {transform_indices = @transform_1, window_bounds = array<i64: 1, 8, 128>}, {transform_indices = @transform_2, window_bounds = array<i64: 1, 8, 1>}, {transform_indices = @transform_3, window_bounds = array<i64: 1, 1, 8>}, {transform_indices = @transform_4, window_bounds = array<i64: 1, 8, 8>}, {transform_indices = @transform_5, window_bounds = array<i64: 1, 1, 1>}, {pipeline_mode = #tpu.pipeline_mode<synchronous>, transform_indices = @transform_6, window_bounds = array<i64: 128, 256>}, {pipeline_mode = #tpu.pipeline_mode<synchronous>, transform_indices = @transform_7, window_bounds = array<i64: 1, 128>}, {pipeline_mode = #tpu.pipeline_mode<synchronous>, transform_indices = @transform_8, window_bounds = array<i64: 1, 128>}, {pipeline_mode = #tpu.pipeline_mode<synchronous>, transform_indices = @transform_9, window_bounds = array<i64: 128, 128>}, {pipeline_mode = #tpu.pipeline_mode<synchronous>, transform_indices = @transform_10, window_bounds = array<i64: 128, 256>}, {pipeline_mode = #tpu.pipeline_mode<synchronous>, transform_indices = @transform_11, window_bounds = array<i64: 128, 1>}, {pipeline_mode = #tpu.pipeline_mode<synchronous>, transform_indices = @transform_12, window_bounds = array<i64: 256, 128>}, {pipeline_mode = #tpu.pipeline_mode<synchronous>, transform_indices = @transform_13, window_bounds = array<i64: 128, 128>}, {transform_indices = @transform_14, window_bounds = array<i64: 1, 8, 128>}, {transform_indices = @transform_15, window_bounds = array<i64: 1, 8, 128>}]} {
    %c0 = arith.constant 0 : index
    %c0_0 = arith.constant 0 : index
    %c0_1 = arith.constant 0 : index
    %0 = vector.load %arg1[%c0, %c0_0, %c0_1] : memref<1x8x128xf32, #tpu.memory_space<vmem>>, vector<1x8x128xf32>
    %c0_2 = arith.constant 0 : index
    %c0_3 = arith.constant 0 : index
    %c0_4 = arith.constant 0 : index
    %1 = vector.load %arg2[%c0_2, %c0_3, %c0_4] : memref<1x8x128xf32, #tpu.memory_space<vmem>>, vector<1x8x128xf32>
    %c0_5 = arith.constant 0 : index
    %c0_6 = arith.constant 0 : index
    %c0_7 = arith.constant 0 : index
    %2 = vector.load %arg3[%c0_5, %c0_6, %c0_7] : memref<1x8x1xf32, #tpu.memory_space<vmem>>, vector<1x8x1xf32>
    %c0_8 = arith.constant 0 : index
    %c0_9 = arith.constant 0 : index
    %c0_10 = arith.constant 0 : index
    %3 = vector.load %arg4[%c0_8, %c0_9, %c0_10] : memref<1x1x8xf32, #tpu.memory_space<vmem>>, vector<1x1x8xf32>
    %c0_11 = arith.constant 0 : index
    %c0_12 = arith.constant 0 : index
    %c0_13 = arith.constant 0 : index
    %4 = vector.load %arg5[%c0_11, %c0_12, %c0_13] : memref<1x8x8xf32, #tpu.memory_space<vmem>>, vector<1x8x8xf32>
    %c0_14 = arith.constant 0 : index
    %c0_15 = arith.constant 0 : index
    %c0_16 = arith.constant 0 : index
    %5 = vector.load %arg6[%c0_14, %c0_15, %c0_16] : memref<1x1x1xf32, #tpu.memory_space<vmem>>, vector<1x1x1xf32>
    "tpu.trace_start"() <{level = 10 : i32, message = "bnd,bmd->bnm"}> : () -> ()
    %cst = arith.constant dense<0.000000e+00> : vector<1x8x8xf32>
    %6 = tpu.matmul %1, %1, %cst {dimension_numbers = #tpu.dot_dimension_numbers<[2], [2], [1], [1], [0, 0, 0, 1, 1, 1], [0], [0]>} : vector<1x8x128xf32>, vector<1x8x128xf32>, vector<1x8x8xf32> -> vector<1x8x8xf32>
    "tpu.trace_stop"() : () -> ()
    %7 = arith.mulf %1, %1 : vector<1x8x128xf32>
    %cst_17 = arith.constant dense<0.000000e+00> : vector<1x8xf32>
    %8 = vector.multi_reduction <add>, %7, %cst_17 [2] : vector<1x8x128xf32> to vector<1x8xf32>
    %9 = vector.shape_cast %8 : vector<1x8xf32> to vector<1x8x1xf32>
    %10 = vector.shape_cast %8 : vector<1x8xf32> to vector<1x1x8xf32>
    %11 = vector.broadcast %9 : vector<1x8x1xf32> to vector<1x8x8xf32>
    %12 = vector.broadcast %10 : vector<1x1x8xf32> to vector<1x8x8xf32>
    %13 = arith.addf %11, %12 : vector<1x8x8xf32>
    %cst_18 = arith.constant 2.000000e+00 : f32
    %14 = vector.broadcast %cst_18 : f32 to vector<1x8x8xf32>
    %15 = arith.mulf %14, %6 : vector<1x8x8xf32>
    %16 = arith.subf %13, %15 : vector<1x8x8xf32>
    %cst_19 = arith.constant 0.000000e+00 : f32
    %17 = vector.broadcast %cst_19 : f32 to vector<1x8x8xf32>
    %18 = arith.maximumf %16, %17 : vector<1x8x8xf32>
    %19 = vector.shape_cast %0 : vector<1x8x128xf32> to vector<8x128xf32>
    %c0_20 = arith.constant 0 : index
    %c0_21 = arith.constant 0 : index
    %20 = vector.load %arg7[%c0_20, %c0_21] : memref<128x256xf32, #tpu.memory_space<vmem>>, vector<128x256xf32>
    %cst_22 = arith.constant dense<0.000000e+00> : vector<8x256xf32>
    %21 = tpu.matmul %19, %20, %cst_22 {dimension_numbers = #tpu.dot_dimension_numbers<[1], [0], [0], [1], [0, 0, 1, 1], [], []>} : vector<8x128xf32>, vector<128x256xf32>, vector<8x256xf32> -> vector<8x256xf32>
    %22 = vector.extract_strided_slice %21 {offsets = [0, 0], sizes = [8, 128], strides = [1, 1]} : vector<8x256xf32> to vector<8x128xf32>
    %23 = vector.shape_cast %22 : vector<8x128xf32> to vector<1x8x128xf32>
    %24 = vector.extract_strided_slice %21 {offsets = [0, 128], sizes = [8, 128], strides = [1, 1]} : vector<8x256xf32> to vector<8x128xf32>
    %25 = vector.shape_cast %24 : vector<8x128xf32> to vector<1x8x128xf32>
    %26 = vector.shape_cast %23 : vector<1x8x128xf32> to vector<1x8x1x128xf32>
    %27 = vector.shape_cast %25 : vector<1x8x128xf32> to vector<1x1x8x128xf32>
    %28 = vector.broadcast %26 : vector<1x8x1x128xf32> to vector<1x8x8x128xf32>
    %29 = vector.broadcast %27 : vector<1x1x8x128xf32> to vector<1x8x8x128xf32>
    %30 = arith.addf %28, %29 : vector<1x8x8x128xf32>
    %31 = vector.shape_cast %18 : vector<1x8x8xf32> to vector<1x8x8x1xf32>
    %c0_23 = arith.constant 0 : index
    %c0_24 = arith.constant 0 : index
    %32 = vector.load %arg8[%c0_23, %c0_24] : memref<1x128xf32, #tpu.memory_space<vmem>>, vector<1x128xf32>
    %33 = vector.shape_cast %32 : vector<1x128xf32> to vector<1x1x1x128xf32>
    %34 = vector.broadcast %31 : vector<1x8x8x1xf32> to vector<1x8x8x128xf32>
    %35 = vector.broadcast %33 : vector<1x1x1x128xf32> to vector<1x8x8x128xf32>
    %36 = arith.mulf %34, %35 : vector<1x8x8x128xf32>
    %37 = arith.addf %30, %36 : vector<1x8x8x128xf32>
    %38 = vector.shape_cast %4 : vector<1x8x8xf32> to vector<1x8x8x1xf32>
    %c0_25 = arith.constant 0 : index
    %c0_26 = arith.constant 0 : index
    %39 = vector.load %arg9[%c0_25, %c0_26] : memref<1x128xf32, #tpu.memory_space<vmem>>, vector<1x128xf32>
    %40 = vector.shape_cast %39 : vector<1x128xf32> to vector<1x1x1x128xf32>
    %41 = vector.broadcast %38 : vector<1x8x8x1xf32> to vector<1x8x8x128xf32>
    %42 = vector.broadcast %40 : vector<1x1x1x128xf32> to vector<1x8x8x128xf32>
    %43 = arith.mulf %41, %42 : vector<1x8x8x128xf32>
    %44 = arith.addf %37, %43 : vector<1x8x8x128xf32>
    %cst_27 = arith.constant 0.000000e+00 : f32
    %45 = vector.broadcast %cst_27 : f32 to vector<1x8x8x128xf32>
    %46 = arith.subf %45, %44 : vector<1x8x8x128xf32>
    %47 = math.exp %46 : vector<1x8x8x128xf32>
    %cst_28 = arith.constant 1.000000e+00 : f32
    %48 = vector.broadcast %cst_28 : f32 to vector<1x8x8x128xf32>
    %49 = arith.addf %48, %47 : vector<1x8x8x128xf32>
    %50 = tpu.reciprocal %49 {approx = true} : vector<1x8x8x128xf32> -> vector<1x8x8x128xf32>
    %51 = arith.mulf %44, %50 : vector<1x8x8x128xf32>
    %52 = vector.shape_cast %51 : vector<1x8x8x128xf32> to vector<64x128xf32>
    %c0_29 = arith.constant 0 : index
    %c0_30 = arith.constant 0 : index
    %53 = vector.load %arg10[%c0_29, %c0_30] : memref<128x128xf32, #tpu.memory_space<vmem>>, vector<128x128xf32>
    %cst_31 = arith.constant dense<0.000000e+00> : vector<64x128xf32>
    %54 = tpu.matmul %52, %53, %cst_31 {dimension_numbers = #tpu.dot_dimension_numbers<[1], [0], [0], [1], [0, 0, 1, 1], [], []>} : vector<64x128xf32>, vector<128x128xf32>, vector<64x128xf32> -> vector<64x128xf32>
    %cst_32 = arith.constant 0.000000e+00 : f32
    %55 = vector.broadcast %cst_32 : f32 to vector<64x128xf32>
    %56 = arith.subf %55, %54 : vector<64x128xf32>
    %57 = math.exp %56 : vector<64x128xf32>
    %cst_33 = arith.constant 1.000000e+00 : f32
    %58 = vector.broadcast %cst_33 : f32 to vector<64x128xf32>
    %59 = arith.addf %58, %57 : vector<64x128xf32>
    %60 = tpu.reciprocal %59 {approx = true} : vector<64x128xf32> -> vector<64x128xf32>
    %61 = arith.mulf %54, %60 : vector<64x128xf32>
    %c0_34 = arith.constant 0 : index
    %c0_35 = arith.constant 0 : index
    %62 = vector.load %arg11[%c0_34, %c0_35] : memref<128x256xf32, #tpu.memory_space<vmem>>, vector<128x256xf32>
    %cst_36 = arith.constant dense<0.000000e+00> : vector<64x256xf32>
    %63 = tpu.matmul %61, %62, %cst_36 {dimension_numbers = #tpu.dot_dimension_numbers<[1], [0], [0], [1], [0, 0, 1, 1], [], []>} : vector<64x128xf32>, vector<128x256xf32>, vector<64x256xf32> -> vector<64x256xf32>
    %64 = vector.extract_strided_slice %63 {offsets = [0, 0], sizes = [64, 128], strides = [1, 1]} : vector<64x256xf32> to vector<64x128xf32>
    %cst_37 = arith.constant 0.000000e+00 : f32
    %65 = vector.broadcast %cst_37 : f32 to vector<64x128xf32>
    %66 = arith.subf %65, %64 : vector<64x128xf32>
    %67 = math.exp %66 : vector<64x128xf32>
    %cst_38 = arith.constant 1.000000e+00 : f32
    %68 = vector.broadcast %cst_38 : f32 to vector<64x128xf32>
    %69 = arith.addf %68, %67 : vector<64x128xf32>
    %70 = tpu.reciprocal %69 {approx = true} : vector<64x128xf32> -> vector<64x128xf32>
    %71 = arith.mulf %64, %70 : vector<64x128xf32>
    %72 = vector.extract_strided_slice %63 {offsets = [0, 128], sizes = [64, 1], strides = [1, 1]} : vector<64x256xf32> to vector<64x1xf32>
    %cst_39 = arith.constant 0.000000e+00 : f32
    %73 = vector.broadcast %cst_39 : f32 to vector<64x1xf32>
    %74 = arith.subf %73, %72 : vector<64x1xf32>
    %75 = math.exp %74 : vector<64x1xf32>
    %cst_40 = arith.constant 1.000000e+00 : f32
    %76 = vector.broadcast %cst_40 : f32 to vector<64x1xf32>
    %77 = arith.addf %76, %75 : vector<64x1xf32>
    %78 = tpu.reciprocal %77 {approx = true} : vector<64x1xf32> -> vector<64x1xf32>
    %c0_41 = arith.constant 0 : index
    %c0_42 = arith.constant 0 : index
    %79 = vector.load %arg12[%c0_41, %c0_42] : memref<128x1xf32, #tpu.memory_space<vmem>>, vector<128x1xf32>
    %cst_43 = arith.constant dense<0.000000e+00> : vector<64x1xf32>
    %80 = tpu.matmul %71, %79, %cst_43 {dimension_numbers = #tpu.dot_dimension_numbers<[1], [0], [0], [1], [0, 0, 1, 1], [], []>} : vector<64x128xf32>, vector<128x1xf32>, vector<64x1xf32> -> vector<64x1xf32>
    %81 = vector.shape_cast %80 : vector<64x1xf32> to vector<1x8x8xf32>
    %82 = vector.broadcast %2 : vector<1x8x1xf32> to vector<1x8x8xf32>
    %83 = vector.broadcast %3 : vector<1x1x8xf32> to vector<1x8x8xf32>
    %84 = arith.mulf %82, %83 : vector<1x8x8xf32>
    %85 = tpu.iota {dimensions = array<i32: 0>} : vector<8x8xi32>
    %86 = tpu.iota {dimensions = array<i32: 1>} : vector<8x8xi32>
    %87 = arith.cmpi ne, %85, %86 : vector<8x8xi32>
    %88 = arith.extui %87 : vector<8x8xi1> to vector<8x8xi32>
    %89 = arith.sitofp %88 : vector<8x8xi32> to vector<8x8xf32>
    %cst_44 = arith.constant 9.99999968E-21 : f32
    %90 = vector.broadcast %cst_44 : f32 to vector<1x8x8xf32>
    %91 = arith.maximumf %18, %90 : vector<1x8x8xf32>
    %92 = math.rsqrt %91 : vector<1x8x8xf32>
    %93 = arith.mulf %81, %84 : vector<1x8x8xf32>
    %94 = arith.mulf %93, %92 : vector<1x8x8xf32>
    %95 = vector.shape_cast %89 : vector<8x8xf32> to vector<1x8x8xf32>
    %96 = arith.mulf %94, %95 : vector<1x8x8xf32>
    "tpu.trace_start"() <{level = 10 : i32, message = "bij,bjd->bid"}> : () -> ()
    %cst_45 = arith.constant dense<0.000000e+00> : vector<1x8x128xf32>
    %97 = tpu.matmul %96, %1, %cst_45 {dimension_numbers = #tpu.dot_dimension_numbers<[2], [1], [1], [2], [0, 0, 0, 1, 1, 2], [0], [0]>} : vector<1x8x8xf32>, vector<1x8x128xf32>, vector<1x8x128xf32> -> vector<1x8x128xf32>
    "tpu.trace_stop"() : () -> ()
    %cst_46 = arith.constant dense<0.000000e+00> : vector<1x8xf32>
    %98 = vector.multi_reduction <add>, %96, %cst_46 [2] : vector<1x8x8xf32> to vector<1x8xf32>
    %99 = vector.shape_cast %98 : vector<1x8xf32> to vector<1x8x1xf32>
    %100 = vector.broadcast %99 : vector<1x8x1xf32> to vector<1x8x128xf32>
    %101 = arith.mulf %100, %1 : vector<1x8x128xf32>
    %102 = arith.subf %101, %97 : vector<1x8x128xf32>
    %103 = vector.broadcast %5 : vector<1x1x1xf32> to vector<1x8x128xf32>
    %104 = arith.mulf %103, %102 : vector<1x8x128xf32>
    %105 = arith.addf %1, %104 : vector<1x8x128xf32>
    %106 = vector.broadcast %78 : vector<64x1xf32> to vector<64x128xf32>
    %107 = arith.mulf %61, %106 : vector<64x128xf32>
    %108 = vector.shape_cast %107 : vector<64x128xf32> to vector<1x8x8x128xf32>
    %109 = vector.shape_cast %4 : vector<1x8x8xf32> to vector<1x8x8x1xf32>
    %110 = vector.broadcast %109 : vector<1x8x8x1xf32> to vector<1x8x8x128xf32>
    %111 = arith.mulf %108, %110 : vector<1x8x8x128xf32>
    %cst_47 = arith.constant dense<0.000000e+00> : vector<1x8x128xf32>
    %112 = vector.multi_reduction <add>, %111, %cst_47 [2] : vector<1x8x8x128xf32> to vector<1x8x128xf32>
    %113 = vector.shape_cast %112 : vector<1x8x128xf32> to vector<8x128xf32>
    %114 = tpu.concatenate %19, %113 in 1 : vector<8x128xf32>, vector<8x128xf32> -> vector<8x256xf32>
    %c0_48 = arith.constant 0 : index
    %c0_49 = arith.constant 0 : index
    %115 = vector.load %arg13[%c0_48, %c0_49] : memref<256x128xf32, #tpu.memory_space<vmem>>, vector<256x128xf32>
    %cst_50 = arith.constant dense<0.000000e+00> : vector<8x128xf32>
    %116 = tpu.matmul %114, %115, %cst_50 {dimension_numbers = #tpu.dot_dimension_numbers<[1], [0], [0], [1], [0, 0, 1, 1], [], []>} : vector<8x256xf32>, vector<256x128xf32>, vector<8x128xf32> -> vector<8x128xf32>
    %cst_51 = arith.constant 0.000000e+00 : f32
    %117 = vector.broadcast %cst_51 : f32 to vector<8x128xf32>
    %118 = arith.subf %117, %116 : vector<8x128xf32>
    %119 = math.exp %118 : vector<8x128xf32>
    %cst_52 = arith.constant 1.000000e+00 : f32
    %120 = vector.broadcast %cst_52 : f32 to vector<8x128xf32>
    %121 = arith.addf %120, %119 : vector<8x128xf32>
    %122 = tpu.reciprocal %121 {approx = true} : vector<8x128xf32> -> vector<8x128xf32>
    %123 = arith.mulf %116, %122 : vector<8x128xf32>
    %c0_53 = arith.constant 0 : index
    %c0_54 = arith.constant 0 : index
    %124 = vector.load %arg14[%c0_53, %c0_54] : memref<128x128xf32, #tpu.memory_space<vmem>>, vector<128x128xf32>
    %cst_55 = arith.constant dense<0.000000e+00> : vector<8x128xf32>
    %125 = tpu.matmul %123, %124, %cst_55 {dimension_numbers = #tpu.dot_dimension_numbers<[1], [0], [0], [1], [0, 0, 1, 1], [], []>} : vector<8x128xf32>, vector<128x128xf32>, vector<8x128xf32> -> vector<8x128xf32>
    %126 = arith.addf %19, %125 : vector<8x128xf32>
    %127 = vector.shape_cast %126 : vector<8x128xf32> to vector<1x8x128xf32>
    %c0_56 = arith.constant 0 : index
    %c0_57 = arith.constant 0 : index
    %c0_58 = arith.constant 0 : index
    %128 = vector.load %arg15[%c0_56, %c0_57, %c0_58] : memref<1x8x128xf32, #tpu.memory_space<vmem>>, vector<1x8x128xf32>
    tpu.vector_store %arg15[%c0_56, %c0_57, %c0_58], %127 {strides = array<i32>} : memref<1x8x128xf32, #tpu.memory_space<vmem>>, vector<1x8x128xf32>,
    %c0_59 = arith.constant 0 : index
    %c0_60 = arith.constant 0 : index
    %c0_61 = arith.constant 0 : index
    %129 = vector.load %arg16[%c0_59, %c0_60, %c0_61] : memref<1x8x128xf32, #tpu.memory_space<vmem>>, vector<1x8x128xf32>
    tpu.vector_store %arg16[%c0_59, %c0_60, %c0_61], %105 {strides = array<i32>} : memref<1x8x128xf32, #tpu.memory_space<vmem>>, vector<1x8x128xf32>,
    return
  }
  func.func @transform_0(%arg0: i32) -> (i32, i32, i32) {
    %c0_i32 = arith.constant 0 : i32
    %c0_i32_0 = arith.constant 0 : i32
    %c0_i32_1 = arith.constant 0 : i32
    return %arg0, %c0_i32, %c0_i32_0 : i32, i32, i32
  }
  func.func @transform_1(%arg0: i32) -> (i32, i32, i32) {
    %c0_i32 = arith.constant 0 : i32
    %c0_i32_0 = arith.constant 0 : i32
    %c0_i32_1 = arith.constant 0 : i32
    return %arg0, %c0_i32, %c0_i32_0 : i32, i32, i32
  }
  func.func @transform_2(%arg0: i32) -> (i32, i32, i32) {
    %c0_i32 = arith.constant 0 : i32
    %c0_i32_0 = arith.constant 0 : i32
    %c0_i32_1 = arith.constant 0 : i32
    return %arg0, %c0_i32, %c0_i32_0 : i32, i32, i32
  }
  func.func @transform_3(%arg0: i32) -> (i32, i32, i32) {
    %c0_i32 = arith.constant 0 : i32
    %c0_i32_0 = arith.constant 0 : i32
    %c0_i32_1 = arith.constant 0 : i32
    return %arg0, %c0_i32, %c0_i32_0 : i32, i32, i32
  }
  func.func @transform_4(%arg0: i32) -> (i32, i32, i32) {
    %c0_i32 = arith.constant 0 : i32
    %c0_i32_0 = arith.constant 0 : i32
    %c0_i32_1 = arith.constant 0 : i32
    return %arg0, %c0_i32, %c0_i32_0 : i32, i32, i32
  }
  func.func @transform_5(%arg0: i32) -> (i32, i32, i32) {
    %c0_i32 = arith.constant 0 : i32
    %c0_i32_0 = arith.constant 0 : i32
    %c0_i32_1 = arith.constant 0 : i32
    return %arg0, %c0_i32, %c0_i32_0 : i32, i32, i32
  }
  func.func @transform_6(%arg0: i32) -> (i32, i32) {
    %c0_i32 = arith.constant 0 : i32
    %c0_i32_0 = arith.constant 0 : i32
    %c0_i32_1 = arith.constant 0 : i32
    return %c0_i32, %c0_i32_0 : i32, i32
  }
  func.func @transform_7(%arg0: i32) -> (i32, i32) {
    %c0_i32 = arith.constant 0 : i32
    %c0_i32_0 = arith.constant 0 : i32
    %c0_i32_1 = arith.constant 0 : i32
    return %c0_i32, %c0_i32_0 : i32, i32
  }
  func.func @transform_8(%arg0: i32) -> (i32, i32) {
    %c0_i32 = arith.constant 0 : i32
    %c0_i32_0 = arith.constant 0 : i32
    %c0_i32_1 = arith.constant 0 : i32
    return %c0_i32, %c0_i32_0 : i32, i32
  }
  func.func @transform_9(%arg0: i32) -> (i32, i32) {
    %c0_i32 = arith.constant 0 : i32
    %c0_i32_0 = arith.constant 0 : i32
    %c0_i32_1 = arith.constant 0 : i32
    return %c0_i32, %c0_i32_0 : i32, i32
  }
  func.func @transform_10(%arg0: i32) -> (i32, i32) {
    %c0_i32 = arith.constant 0 : i32
    %c0_i32_0 = arith.constant 0 : i32
    %c0_i32_1 = arith.constant 0 : i32
    return %c0_i32, %c0_i32_0 : i32, i32
  }
  func.func @transform_11(%arg0: i32) -> (i32, i32) {
    %c0_i32 = arith.constant 0 : i32
    %c0_i32_0 = arith.constant 0 : i32
    %c0_i32_1 = arith.constant 0 : i32
    return %c0_i32, %c0_i32_0 : i32, i32
  }
  func.func @transform_12(%arg0: i32) -> (i32, i32) {
    %c0_i32 = arith.constant 0 : i32
    %c0_i32_0 = arith.constant 0 : i32
    %c0_i32_1 = arith.constant 0 : i32
    return %c0_i32, %c0_i32_0 : i32, i32
  }
  func.func @transform_13(%arg0: i32) -> (i32, i32) {
    %c0_i32 = arith.constant 0 : i32
    %c0_i32_0 = arith.constant 0 : i32
    %c0_i32_1 = arith.constant 0 : i32
    return %c0_i32, %c0_i32_0 : i32, i32
  }
  func.func @transform_14(%arg0: i32) -> (i32, i32, i32) {
    %c0_i32 = arith.constant 0 : i32
    %c0_i32_0 = arith.constant 0 : i32
    %c0_i32_1 = arith.constant 0 : i32
    return %arg0, %c0_i32, %c0_i32_0 : i32, i32, i32
  }
  func.func @transform_15(%arg0: i32) -> (i32, i32, i32) {
    %c0_i32 = arith.constant 0 : i32
    %c0_i32_0 = arith.constant 0 : i32
    %c0_i32_1 = arith.constant 0 : i32
    return %arg0, %c0_i32, %c0_i32_0 : i32, i32, i32
  }
}

</mosaic_0001>

<llo_original>
// kernel: tpu_custom_call.1
$region0: #{tpu_custom_call.1}
  #allocation0 [shape = 'u32[]', space=smem, size = 0x4, offset = 0x4, fixed_abs, tag = 'smem constant byte address 0x4 - core index']
  #allocation1 [shape = 'u32[144,128]{1,0:T(1,128)}', space=vmem, size = 0x12000, scoped, tag = 'internal scratch']
  %s0 = inlined_call_operand.vmem [shape: f32[2,8,128], index: 0, kind: input, shape index: {}]
  %s1 = inlined_call_operand.vmem [shape: f32[2,8,128], index: 1, kind: input, shape index: {}]
  %s2 = inlined_call_operand.vmem [shape: f32[2,8,1], index: 2, kind: input, shape index: {}]
  %s3 = inlined_call_operand.vmem [shape: f32[2,1,8], index: 3, kind: input, shape index: {}]
  %s4 = inlined_call_operand.hbm [shape: f32[2,8,8], index: 4, kind: input, shape index: {}]
  %s5 = inlined_call_operand.vmem [shape: f32[2,1,1], index: 5, kind: input, shape index: {}]
  %s6 = inlined_call_operand.hbm [shape: f32[128,256], index: 6, kind: input, shape index: {}]
  %s7 = inlined_call_operand.vmem [shape: f32[1,128], index: 7, kind: input, shape index: {}]
  %s8 = inlined_call_operand.vmem [shape: f32[1,128], index: 8, kind: input, shape index: {}]
  %s9 = inlined_call_operand.vmem [shape: f32[128,128], index: 9, kind: input, shape index: {}]
  %s10 = inlined_call_operand.hbm [shape: f32[128,256], index: 10, kind: input, shape index: {}]
  %s11 = inlined_call_operand.vmem [shape: f32[128,1], index: 11, kind: input, shape index: {}]
  %s12 = inlined_call_operand.hbm [shape: f32[256,128], index: 12, kind: input, shape index: {}]
  %s13 = inlined_call_operand.hbm [shape: f32[128,128], index: 13, kind: input, shape index: {}]
  %s14 = inlined_call_operand.hbm [shape: f32[2,8,128], index: 14, kind: output, shape index: {0}]
  %s15 = inlined_call_operand.hbm [shape: f32[2,8,128], index: 15, kind: output, shape index: {1}]
  %16 = xla_tuple %s14, %s15
  %s17 = sld [smem:[#allocation0]]
  $region117: #{tpu_custom_call.1} parent=0
    _
  %s19 = ssub.s32 1, %s17
  %s20 = scalar_select 0, %s19, %s17
  $region1: #{tpu_custom_call.1} parent=0
    #allocation2 [shape = 'u8[8192]{0}', space=vmem, size = 0x2000, scoped, tag = 'input window, operand 4']
    #allocation3 [shape = 's32[2]{0}', space=sflag, size = 0x8, scoped, tag = 'scoped memory for tpu_custom_call.1']
    #allocation4 [shape = 's32[2]{0}', space=sflag, size = 0x8, scoped, tag = 'scoped memory for tpu_custom_call.1']
    #allocation5 [shape = 'u8[131072]{0}', space=vmem, size = 0x20000, scoped, tag = 'input window, operand 6, single buffered']
    #allocation6 [shape = 's32[1]{0}', space=sflag, size = 0x4, scoped, tag = 'scoped memory for tpu_custom_call.1']
    #allocation7 [shape = 'u8[131072]{0}', space=vmem, size = 0x20000, scoped, tag = 'input window, operand 10, single buffered']
    #allocation8 [shape = 'u8[131072]{0}', space=vmem, size = 0x20000, scoped, tag = 'input window, operand 12, single buffered']
    #allocation9 [shape = 's32[1]{0}', space=sflag, size = 0x4, scoped, tag = 'scoped memory for tpu_custom_call.1']
    #allocation10 [shape = 'u8[65536]{0}', space=vmem, size = 0x10000, scoped, tag = 'input window, operand 13, single buffered']
    #allocation11 [shape = 'u8[8192]{0}', space=vmem, size = 0x2000, scoped, tag = 'output window, operand 0']
    #allocation12 [shape = 'u8[8192]{0}', space=vmem, size = 0x2000, scoped, tag = 'output window, operand 1']
    #allocation13 [shape = 's32[2]{0}', space=sflag, size = 0x8, scoped, tag = 'scoped memory for tpu_custom_call.1']
    %21 = vsyncpa [#allocation3], 0
    %s22 = scalar_lea.sflag [#allocation3], 1
    %23 = vsyncpa %s22, 0
    %24 = vsyncpa [#allocation6], 0
    %25 = vsyncpa [#allocation9], 0
    %26 = vsyncpa [#allocation4], 0
    %s27 = scalar_lea.sflag [#allocation4], 1
    %28 = vsyncpa %s27, 0
    %29 = vsyncpa [#allocation13], 0
    %s30 = scalar_lea.sflag [#allocation13], 1
    %31 = vsyncpa %s30, 0
    loop: start=0, step=1, limit=4
    $region2: #{tpu_custom_call.1} parent=1 // loop_pre_header
      _
    $region3: #{tpu_custom_call.1} parent=1 // loop_header
      %s33 = sphi 0, %s37
      %p34 = scmp.ge.s32.totalorder %s33, 4
      %s43 = sphi 0, %s45
      %s46 = sphi 0, %s43
      %s47 = sphi 0, %s46
      %s63 = sphi 0, %s47
      %s69 = sphi 0, %s71
      %s72 = sphi 0, %s69
      %s73 = sphi 0, %s72
      %s89 = sphi 0, %s73
      %s95 = sphi 0, %s97
      %s98 = sphi 0, %s95
      %s99 = sphi 0, %s98
      %s115 = sphi 0, %s99
      %s121 = sphi 0, %s123
      %s124 = sphi 0, %s121
      %s125 = sphi 0, %s124
      %s141 = sphi 0, %s125
      %s147 = sphi 0, %s149
      %s150 = sphi 0, %s147
      %s151 = sphi 0, %s150
      %s167 = sphi 0, %s151
      %s173 = sphi 0, %s175
      %s176 = sphi 0, %s173
      %s177 = sphi 0, %s176
      %s193 = sphi 0, %s177
      %s197 = sphi 0, %s197
      %s199 = sphi 0, %s197
      %s200 = sphi 0, %s199
      %s214 = sphi 0, %s200
      %s218 = sphi 0, %s218
      %s220 = sphi 0, %s218
      %s221 = sphi 0, %s220
      %s235 = sphi 0, %s221
      %s239 = sphi 0, %s239
      %s241 = sphi 0, %s239
      %s242 = sphi 0, %s241
      %s256 = sphi 0, %s242
      %s260 = sphi 0, %s260
      %s262 = sphi 0, %s260
      %s263 = sphi 0, %s262
      %s277 = sphi 0, %s263
      %s281 = sphi 0, %s281
      %s283 = sphi 0, %s281
      %s284 = sphi 0, %s283
      %s298 = sphi 0, %s284
      %s302 = sphi 0, %s302
      %s304 = sphi 0, %s302
      %s305 = sphi 0, %s304
      %s319 = sphi 0, %s305
      %s323 = sphi 0, %s323
      %s325 = sphi 0, %s323
      %s326 = sphi 0, %s325
      %s340 = sphi 0, %s326
      %s344 = sphi 0, %s344
      %s346 = sphi 0, %s344
      %s347 = sphi 0, %s346
      %s361 = sphi 0, %s347
      %s367 = sphi 0, %s369
      %s370 = sphi 0, %s367
      %s371 = sphi 0, %s370
      %s387 = sphi 0, %s371
      %s393 = sphi 0, %s395
      %s396 = sphi 0, %s393
      %s397 = sphi 0, %s396
      %s413 = sphi 0, %s397
    $region4: #{tpu_custom_call.1} parent=1 // loop_header_branch
      %36 = sbr.rel (%p34) target = $region8
    $region5: #{tpu_custom_call.1} parent=1 // loop_body
      %s38 = ssub.s32 %s33, 1
      %s39 = ssub.s32 %s33, 2
      %s40 = sadd.s32 %s33, 1
      %s41 = ssub.s32 %s33, %s40
      %p42 = scmp.eq.s32.totalorder %s41, 0
      %s44 = sadd.s32 %s43, 1
      %s45 = scalar_select %p42, %s43, %s44
      %p48 = pneg %p42
      %p49 = scmp.eq.s32.totalorder %s33, 1
      %p50 = por %p48, %p49
      %p51 = scmp.ne.s32.totalorder %s43, %s46
      %p52 = scmp.eq.s32.totalorder %s33, 0
      %p53 = por %p51, %p52
      %p54 = scmp.ne.s32.totalorder %s43, %s46
      %p55 = scmp.eq.s32.totalorder %s38, 1
      %p56 = por %p54, %p55
      %p57 = scmp.ne.s32.totalorder %s46, %s47
      %p58 = scmp.eq.s32.totalorder %s38, 0
      %p59 = por %p57, %p58
      %p60 = scmp.ne.s32.totalorder %s46, %s47
      %p61 = scmp.eq.s32.totalorder %s39, 1
      %p62 = por %p60, %p61
      %p64 = scmp.ne.s32.totalorder %s47, %s63
      %p65 = scmp.eq.s32.totalorder %s39, 0
      %p66 = por %p64, %p65
      %s67 = ssub.s32 %s33, %s40
      %p68 = scmp.eq.s32.totalorder %s67, 0
      %s70 = sadd.s32 %s69, 1
      %s71 = scalar_select %p68, %s69, %s70
      %p74 = pneg %p68
      %p75 = scmp.eq.s32.totalorder %s33, 1
      %p76 = por %p74, %p75
      %p77 = scmp.ne.s32.totalorder %s69, %s72
      %p78 = scmp.eq.s32.totalorder %s33, 0
      %p79 = por %p77, %p78
      %p80 = scmp.ne.s32.totalorder %s69, %s72
      %p81 = scmp.eq.s32.totalorder %s38, 1
      %p82 = por %p80, %p81
      %p83 = scmp.ne.s32.totalorder %s72, %s73
      %p84 = scmp.eq.s32.totalorder %s38, 0
      %p85 = por %p83, %p84
      %p86 = scmp.ne.s32.totalorder %s72, %s73
      %p87 = scmp.eq.s32.totalorder %s39, 1
      %p88 = por %p86, %p87
      %p90 = scmp.ne.s32.totalorder %s73, %s89
      %p91 = scmp.eq.s32.totalorder %s39, 0
      %p92 = por %p90, %p91
      %s93 = ssub.s32 %s33, %s40
      %p94 = scmp.eq.s32.totalorder %s93, 0
      %s96 = sadd.s32 %s95, 1
      %s97 = scalar_select %p94, %s95, %s96
      %p100 = pneg %p94
      %p101 = scmp.eq.s32.totalorder %s33, 1
      %p102 = por %p100, %p101
      %p103 = scmp.ne.s32.totalorder %s95, %s98
      %p104 = scmp.eq.s32.totalorder %s33, 0
      %p105 = por %p103, %p104
      %p106 = scmp.ne.s32.totalorder %s95, %s98
      %p107 = scmp.eq.s32.totalorder %s38, 1
      %p108 = por %p106, %p107
      %p109 = scmp.ne.s32.totalorder %s98, %s99
      %p110 = scmp.eq.s32.totalorder %s38, 0
      %p111 = por %p109, %p110
      %p112 = scmp.ne.s32.totalorder %s98, %s99
      %p113 = scmp.eq.s32.totalorder %s39, 1
      %p114 = por %p112, %p113
      %p116 = scmp.ne.s32.totalorder %s99, %s115
      %p117 = scmp.eq.s32.totalorder %s39, 0
      %p118 = por %p116, %p117
      %s119 = ssub.s32 %s33, %s40
      %p120 = scmp.eq.s32.totalorder %s119, 0
      %s122 = sadd.s32 %s121, 1
      %s123 = scalar_select %p120, %s121, %s122
      %p126 = pneg %p120
      %p127 = scmp.eq.s32.totalorder %s33, 1
      %p128 = por %p126, %p127
      %p129 = scmp.ne.s32.totalorder %s121, %s124
      %p130 = scmp.eq.s32.totalorder %s33, 0
      %p131 = por %p129, %p130
      %p132 = scmp.ne.s32.totalorder %s121, %s124
      %p133 = scmp.eq.s32.totalorder %s38, 1
      %p134 = por %p132, %p133
      %p135 = scmp.ne.s32.totalorder %s124, %s125
      %p136 = scmp.eq.s32.totalorder %s38, 0
      %p137 = por %p135, %p136
      %p138 = scmp.ne.s32.totalorder %s124, %s125
      %p139 = scmp.eq.s32.totalorder %s39, 1
      %p140 = por %p138, %p139
      %p142 = scmp.ne.s32.totalorder %s125, %s141
      %p143 = scmp.eq.s32.totalorder %s39, 0
      %p144 = por %p142, %p143
      %s145 = ssub.s32 %s33, %s40
      %p146 = scmp.eq.s32.totalorder %s145, 0
      %s148 = sadd.s32 %s147, 1
      %s149 = scalar_select %p146, %s147, %s148
      %p152 = pneg %p146
      %p153 = scmp.eq.s32.totalorder %s33, 1
      %p154 = por %p152, %p153
      %p155 = scmp.ne.s32.totalorder %s147, %s150
      %p156 = scmp.eq.s32.totalorder %s33, 0
      %p157 = por %p155, %p156
      %p158 = scmp.ne.s32.totalorder %s147, %s150
      %p159 = scmp.eq.s32.totalorder %s38, 1
      %p160 = por %p158, %p159
      %p161 = scmp.ne.s32.totalorder %s150, %s151
      %p162 = scmp.eq.s32.totalorder %s38, 0
      %p163 = por %p161, %p162
      %p164 = scmp.ne.s32.totalorder %s150, %s151
      %p165 = scmp.eq.s32.totalorder %s39, 1
      %p166 = por %p164, %p165
      %p168 = scmp.ne.s32.totalorder %s151, %s167
      %p169 = scmp.eq.s32.totalorder %s39, 0
      %p170 = por %p168, %p169
      %s171 = ssub.s32 %s33, %s40
      %p172 = scmp.eq.s32.totalorder %s171, 0
      %s174 = sadd.s32 %s173, 1
      %s175 = scalar_select %p172, %s173, %s174
      %p178 = pneg %p172
      %p179 = scmp.eq.s32.totalorder %s33, 1
      %p180 = por %p178, %p179
      %p181 = scmp.ne.s32.totalorder %s173, %s176
      %p182 = scmp.eq.s32.totalorder %s33, 0
      %p183 = por %p181, %p182
      %p184 = scmp.ne.s32.totalorder %s173, %s176
      %p185 = scmp.eq.s32.totalorder %s38, 1
      %p186 = por %p184, %p185
      %p187 = scmp.ne.s32.totalorder %s176, %s177
      %p188 = scmp.eq.s32.totalorder %s38, 0
      %p189 = por %p187, %p188
      %p190 = scmp.ne.s32.totalorder %s176, %s177
      %p191 = scmp.eq.s32.totalorder %s39, 1
      %p192 = por %p190, %p191
      %p194 = scmp.ne.s32.totalorder %s177, %s193
      %p195 = scmp.eq.s32.totalorder %s39, 0
      %p196 = por %p194, %p195
      %s198 = sadd.s32 %s197, 1
      %p201 = scmp.eq.s32.totalorder %s33, 1
      %p202 = scmp.ne.s32.totalorder %s197, %s199
      %p203 = scmp.eq.s32.totalorder %s33, 0
      %p204 = por %p202, %p203
      %p205 = scmp.ne.s32.totalorder %s197, %s199
      %p206 = scmp.eq.s32.totalorder %s38, 1
      %p207 = por %p205, %p206
      %p208 = scmp.ne.s32.totalorder %s199, %s200
      %p209 = scmp.eq.s32.totalorder %s38, 0
      %p210 = por %p208, %p209
      %p211 = scmp.ne.s32.totalorder %s199, %s200
      %p212 = scmp.eq.s32.totalorder %s39, 1
      %p213 = por %p211, %p212
      %p215 = scmp.ne.s32.totalorder %s200, %s214
      %p216 = scmp.eq.s32.totalorder %s39, 0
      %p217 = por %p215, %p216
      %s219 = sadd.s32 %s218, 1
      %p222 = scmp.eq.s32.totalorder %s33, 1
      %p223 = scmp.ne.s32.totalorder %s218, %s220
      %p224 = scmp.eq.s32.totalorder %s33, 0
      %p225 = por %p223, %p224
      %p226 = scmp.ne.s32.totalorder %s218, %s220
      %p227 = scmp.eq.s32.totalorder %s38, 1
      %p228 = por %p226, %p227
      %p229 = scmp.ne.s32.totalorder %s220, %s221
      %p230 = scmp.eq.s32.totalorder %s38, 0
      %p231 = por %p229, %p230
      %p232 = scmp.ne.s32.totalorder %s220, %s221
      %p233 = scmp.eq.s32.totalorder %s39, 1
      %p234 = por %p232, %p233
      %p236 = scmp.ne.s32.totalorder %s221, %s235
      %p237 = scmp.eq.s32.totalorder %s39, 0
      %p238 = por %p236, %p237
      %s240 = sadd.s32 %s239, 1
      %p243 = scmp.eq.s32.totalorder %s33, 1
      %p244 = scmp.ne.s32.totalorder %s239, %s241
      %p245 = scmp.eq.s32.totalorder %s33, 0
      %p246 = por %p244, %p245
      %p247 = scmp.ne.s32.totalorder %s239, %s241
      %p248 = scmp.eq.s32.totalorder %s38, 1
      %p249 = por %p247, %p248
      %p250 = scmp.ne.s32.totalorder %s241, %s242
      %p251 = scmp.eq.s32.totalorder %s38, 0
      %p252 = por %p250, %p251
      %p253 = scmp.ne.s32.totalorder %s241, %s242
      %p254 = scmp.eq.s32.totalorder %s39, 1
      %p255 = por %p253, %p254
      %p257 = scmp.ne.s32.totalorder %s242, %s256
      %p258 = scmp.eq.s32.totalorder %s39, 0
      %p259 = por %p257, %p258
      %s261 = sadd.s32 %s260, 1
      %p264 = scmp.eq.s32.totalorder %s33, 1
      %p265 = scmp.ne.s32.totalorder %s260, %s262
      %p266 = scmp.eq.s32.totalorder %s33, 0
      %p267 = por %p265, %p266
      %p268 = scmp.ne.s32.totalorder %s260, %s262
      %p269 = scmp.eq.s32.totalorder %s38, 1
      %p270 = por %p268, %p269
      %p271 = scmp.ne.s32.totalorder %s262, %s263
      %p272 = scmp.eq.s32.totalorder %s38, 0
      %p273 = por %p271, %p272
      %p274 = scmp.ne.s32.totalorder %s262, %s263
      %p275 = scmp.eq.s32.totalorder %s39, 1
      %p276 = por %p274, %p275
      %p278 = scmp.ne.s32.totalorder %s263, %s277
      %p279 = scmp.eq.s32.totalorder %s39, 0
      %p280 = por %p278, %p279
      %s282 = sadd.s32 %s281, 1
      %p285 = scmp.eq.s32.totalorder %s33, 1
      %p286 = scmp.ne.s32.totalorder %s281, %s283
      %p287 = scmp.eq.s32.totalorder %s33, 0
      %p288 = por %p286, %p287
      %p289 = scmp.ne.s32.totalorder %s281, %s283
      %p290 = scmp.eq.s32.totalorder %s38, 1
      %p291 = por %p289, %p290
      %p292 = scmp.ne.s32.totalorder %s283, %s284
      %p293 = scmp.eq.s32.totalorder %s38, 0
      %p294 = por %p292, %p293
      %p295 = scmp.ne.s32.totalorder %s283, %s284
      %p296 = scmp.eq.s32.totalorder %s39, 1
      %p297 = por %p295, %p296
      %p299 = scmp.ne.s32.totalorder %s284, %s298
      %p300 = scmp.eq.s32.totalorder %s39, 0
      %p301 = por %p299, %p300
      %s303 = sadd.s32 %s302, 1
      %p306 = scmp.eq.s32.totalorder %s33, 1
      %p307 = scmp.ne.s32.totalorder %s302, %s304
      %p308 = scmp.eq.s32.totalorder %s33, 0
      %p309 = por %p307, %p308
      %p310 = scmp.ne.s32.totalorder %s302, %s304
      %p311 = scmp.eq.s32.totalorder %s38, 1
      %p312 = por %p310, %p311
      %p313 = scmp.ne.s32.totalorder %s304, %s305
      %p314 = scmp.eq.s32.totalorder %s38, 0
      %p315 = por %p313, %p314
      %p316 = scmp.ne.s32.totalorder %s304, %s305
      %p317 = scmp.eq.s32.totalorder %s39, 1
      %p318 = por %p316, %p317
      %p320 = scmp.ne.s32.totalorder %s305, %s319
      %p321 = scmp.eq.s32.totalorder %s39, 0
      %p322 = por %p320, %p321
      %s324 = sadd.s32 %s323, 1
      %p327 = scmp.eq.s32.totalorder %s33, 1
      %p328 = scmp.ne.s32.totalorder %s323, %s325
      %p329 = scmp.eq.s32.totalorder %s33, 0
      %p330 = por %p328, %p329
      %p331 = scmp.ne.s32.totalorder %s323, %s325
      %p332 = scmp.eq.s32.totalorder %s38, 1
      %p333 = por %p331, %p332
      %p334 = scmp.ne.s32.totalorder %s325, %s326
      %p335 = scmp.eq.s32.totalorder %s38, 0
      %p336 = por %p334, %p335
      %p337 = scmp.ne.s32.totalorder %s325, %s326
      %p338 = scmp.eq.s32.totalorder %s39, 1
      %p339 = por %p337, %p338
      %p341 = scmp.ne.s32.totalorder %s326, %s340
      %p342 = scmp.eq.s32.totalorder %s39, 0
      %p343 = por %p341, %p342
      %s345 = sadd.s32 %s344, 1
      %p348 = scmp.eq.s32.totalorder %s33, 1
      %p349 = scmp.ne.s32.totalorder %s344, %s346
      %p350 = scmp.eq.s32.totalorder %s33, 0
      %p351 = por %p349, %p350
      %p352 = scmp.ne.s32.totalorder %s344, %s346
      %p353 = scmp.eq.s32.totalorder %s38, 1
      %p354 = por %p352, %p353
      %p355 = scmp.ne.s32.totalorder %s346, %s347
      %p356 = scmp.eq.s32.totalorder %s38, 0
      %p357 = por %p355, %p356
      %p358 = scmp.ne.s32.totalorder %s346, %s347
      %p359 = scmp.eq.s32.totalorder %s39, 1
      %p360 = por %p358, %p359
      %p362 = scmp.ne.s32.totalorder %s347, %s361
      %p363 = scmp.eq.s32.totalorder %s39, 0
      %p364 = por %p362, %p363
      %s365 = ssub.s32 %s33, %s40
      %p366 = scmp.eq.s32.totalorder %s365, 0
      %s368 = sadd.s32 %s367, 1
      %s369 = scalar_select %p366, %s367, %s368
      %p372 = pneg %p366
      %p373 = scmp.eq.s32.totalorder %s33, 1
      %p374 = por %p372, %p373
      %p375 = scmp.ne.s32.totalorder %s367, %s370
      %p376 = scmp.eq.s32.totalorder %s33, 0
      %p377 = por %p375, %p376
      %p378 = scmp.ne.s32.totalorder %s367, %s370
      %p379 = scmp.eq.s32.totalorder %s38, 1
      %p380 = por %p378, %p379
      %p381 = scmp.ne.s32.totalorder %s370, %s371
      %p382 = scmp.eq.s32.totalorder %s38, 0
      %p383 = por %p381, %p382
      %p384 = scmp.ne.s32.totalorder %s370, %s371
      %p385 = scmp.eq.s32.totalorder %s39, 1
      %p386 = por %p384, %p385
      %p388 = scmp.ne.s32.totalorder %s371, %s387
      %p389 = scmp.eq.s32.totalorder %s39, 0
      %p390 = por %p388, %p389
      %s391 = ssub.s32 %s33, %s40
      %p392 = scmp.eq.s32.totalorder %s391, 0
      %s394 = sadd.s32 %s393, 1
      %s395 = scalar_select %p392, %s393, %s394
      %p398 = pneg %p392
      %p399 = scmp.eq.s32.totalorder %s33, 1
      %p400 = por %p398, %p399
      %p401 = scmp.ne.s32.totalorder %s393, %s396
      %p402 = scmp.eq.s32.totalorder %s33, 0
      %p403 = por %p401, %p402
      %p404 = scmp.ne.s32.totalorder %s393, %s396
      %p405 = scmp.eq.s32.totalorder %s38, 1
      %p406 = por %p404, %p405
      %p407 = scmp.ne.s32.totalorder %s396, %s397
      %p408 = scmp.eq.s32.totalorder %s38, 0
      %p409 = por %p407, %p408
      %p410 = scmp.ne.s32.totalorder %s396, %s397
      %p411 = scmp.eq.s32.totalorder %s39, 1
      %p412 = por %p410, %p411
      %p414 = scmp.ne.s32.totalorder %s397, %s413
      %p415 = scmp.eq.s32.totalorder %s39, 0
      %p416 = por %p414, %p415
      %p417 = scmp.le.s32.totalorder 1, %s33
      %p418 = scmp.lt.s32.totalorder %s33, 3
      %p419 = pnand %p417, %p418
      %p420 = pneg %p419
      // Predicated region
      $region9: #{tpu_custom_call.1} parent=5 // pred_check
        _
      $region10: #{tpu_custom_call.1} parent=5 // pred_check_branch
        %422 = sbr.rel (%p419) target = $region12
      $region11: #{tpu_custom_call.1} parent=5 // pred_region
        %s423 = ssub.s32 %s33, 1
        // Predicated region
        $region13: #{tpu_custom_call.1} parent=11 // pred_check
          %p424 = pneg %p210
        $region14: #{tpu_custom_call.1} parent=11 // pred_check_branch
          %426 = sbr.rel (%p424) target = $region16
        $region15: #{tpu_custom_call.1} parent=11 // pred_region
          %s428 = ssub.s32 4096, 4096
          %429 = vsyncadd [#allocation6], %s428
          %s430 = sshll.u32 [#allocation5], 4
          %s431 = int_to_ptr.vmem [resolvable:$true] %s430
          %436 = dma.hbm_to_vmem [thread:$0]  %s6, 4096, %s431, [#allocation6], 256, 256, 16
        $region16: #{tpu_custom_call.1} parent=11 // pred_fallthru
          _
        // Predicated region
        $region17: #{tpu_custom_call.1} parent=11 // pred_check
          %p437 = pneg %p231
        $region18: #{tpu_custom_call.1} parent=11 // pred_check_branch
          %439 = sbr.rel (%p437) target = $region20
        $region19: #{tpu_custom_call.1} parent=11 // pred_region
          _
        $region20: #{tpu_custom_call.1} parent=11 // pred_fallthru
          _
        // Predicated region
        $region21: #{tpu_custom_call.1} parent=11 // pred_check
          %p440 = pneg %p252
        $region22: #{tpu_custom_call.1} parent=11 // pred_check_branch
          %442 = sbr.rel (%p440) target = $region24
        $region23: #{tpu_custom_call.1} parent=11 // pred_region
          _
        $region24: #{tpu_custom_call.1} parent=11 // pred_fallthru
          _
        // Predicated region
        $region25: #{tpu_custom_call.1} parent=11 // pred_check
          %p443 = pneg %p273
        $region26: #{tpu_custom_call.1} parent=11 // pred_check_branch
          %445 = sbr.rel (%p443) target = $region28
        $region27: #{tpu_custom_call.1} parent=11 // pred_region
          _
        $region28: #{tpu_custom_call.1} parent=11 // pred_fallthru
          _
        // Predicated region
        $region29: #{tpu_custom_call.1} parent=11 // pred_check
          %p446 = pneg %p294
        $region30: #{tpu_custom_call.1} parent=11 // pred_check_branch
          %448 = sbr.rel (%p446) target = $region32
        $region31: #{tpu_custom_call.1} parent=11 // pred_region
          %s450 = ssub.s32 4096, 4096
          %451 = vsyncadd [#allocation6], %s450
          %s452 = sshll.u32 [#allocation7], 4
          %s453 = int_to_ptr.vmem [resolvable:$true] %s452
          %458 = dma.hbm_to_vmem [thread:$0]  %s10, 4096, %s453, [#allocation6], 256, 256, 16
        $region32: #{tpu_custom_call.1} parent=11 // pred_fallthru
          _
        // Predicated region
        $region33: #{tpu_custom_call.1} parent=11 // pred_check
          %p459 = pneg %p315
        $region34: #{tpu_custom_call.1} parent=11 // pred_check_branch
          %461 = sbr.rel (%p459) target = $region36
        $region35: #{tpu_custom_call.1} parent=11 // pred_region
          _
        $region36: #{tpu_custom_call.1} parent=11 // pred_fallthru
          _
        // Predicated region
        $region37: #{tpu_custom_call.1} parent=11 // pred_check
          %p462 = pneg %p336
        $region38: #{tpu_custom_call.1} parent=11 // pred_check_branch
          %464 = sbr.rel (%p462) target = $region40
        $region39: #{tpu_custom_call.1} parent=11 // pred_region
          %s466 = ssub.s32 4096, 4096
          %467 = vsyncadd [#allocation9], %s466
          %s468 = sshll.u32 [#allocation8], 4
          %s469 = int_to_ptr.vmem [resolvable:$true] %s468
          %474 = dma.hbm_to_vmem [thread:$0]  %s12, 4096, %s469, [#allocation9], 128, 128, 8
        $region40: #{tpu_custom_call.1} parent=11 // pred_fallthru
          _
        // Predicated region
        $region41: #{tpu_custom_call.1} parent=11 // pred_check
          %p475 = pneg %p357
        $region42: #{tpu_custom_call.1} parent=11 // pred_check_branch
          %477 = sbr.rel (%p475) target = $region44
        $region43: #{tpu_custom_call.1} parent=11 // pred_region
          %s479 = ssub.s32 2048, 2048
          %480 = vsyncadd [#allocation9], %s479
          %s481 = sshll.u32 [#allocation10], 4
          %s482 = int_to_ptr.vmem [resolvable:$true] %s481
          %487 = dma.hbm_to_vmem [thread:$0]  %s13, 2048, %s482, [#allocation9], 128, 128, 8
        $region44: #{tpu_custom_call.1} parent=11 // pred_fallthru
          _
      $region12: #{tpu_custom_call.1} parent=5 // pred_fallthru
        _
      %p488 = scmp.lt.s32.totalorder %s33, 2
      // Predicated region
      $region45: #{tpu_custom_call.1} parent=5 // pred_check
        %p489 = pneg %p488
      $region46: #{tpu_custom_call.1} parent=5 // pred_check_branch
        %491 = sbr.rel (%p489) target = $region48
      $region47: #{tpu_custom_call.1} parent=5 // pred_region
        // Predicated region
        $region49: #{tpu_custom_call.1} parent=47 // pred_check
          %p492 = pneg %p53
        $region50: #{tpu_custom_call.1} parent=47 // pred_check_branch
          %494 = sbr.rel (%p492) target = $region52
        $region51: #{tpu_custom_call.1} parent=47 // pred_region
          %p495 = scmp.lt.s32.totalorder %s33, 1
          %s496 = scalar_select %p495, %s33, 1
          %s497 = smul.addr %s496, 8
          %s498 = scalar_lea.vmem %s0, %s497
        $region52: #{tpu_custom_call.1} parent=47 // pred_fallthru
          _
        // Predicated region
        $region53: #{tpu_custom_call.1} parent=47 // pred_check
          %p499 = pneg %p79
        $region54: #{tpu_custom_call.1} parent=47 // pred_check_branch
          %501 = sbr.rel (%p499) target = $region56
        $region55: #{tpu_custom_call.1} parent=47 // pred_region
          %p502 = scmp.lt.s32.totalorder %s33, 1
          %s503 = scalar_select %p502, %s33, 1
          %s504 = smul.addr %s503, 8
          %s505 = scalar_lea.vmem %s1, %s504
        $region56: #{tpu_custom_call.1} parent=47 // pred_fallthru
          _
        // Predicated region
        $region57: #{tpu_custom_call.1} parent=47 // pred_check
          %p506 = pneg %p105
        $region58: #{tpu_custom_call.1} parent=47 // pred_check_branch
          %508 = sbr.rel (%p506) target = $region60
        $region59: #{tpu_custom_call.1} parent=47 // pred_region
          %p509 = scmp.lt.s32.totalorder %s33, 1
          %s510 = scalar_select %p509, %s33, 1
          %s511 = smul.addr %s510, 8
          %s512 = scalar_lea.vmem %s2, %s511
        $region60: #{tpu_custom_call.1} parent=47 // pred_fallthru
          _
        // Predicated region
        $region61: #{tpu_custom_call.1} parent=47 // pred_check
          %p513 = pneg %p131
        $region62: #{tpu_custom_call.1} parent=47 // pred_check_branch
          %515 = sbr.rel (%p513) target = $region64
        $region63: #{tpu_custom_call.1} parent=47 // pred_region
          %p516 = scmp.lt.s32.totalorder %s33, 1
          %s517 = scalar_select %p516, %s33, 1
          %s518 = scalar_lea.vmem %s3, %s517
        $region64: #{tpu_custom_call.1} parent=47 // pred_fallthru
          _
        // Predicated region
        $region65: #{tpu_custom_call.1} parent=47 // pred_check
          %p519 = pneg %p157
        $region66: #{tpu_custom_call.1} parent=47 // pred_check_branch
          %521 = sbr.rel (%p519) target = $region68
        $region67: #{tpu_custom_call.1} parent=47 // pred_region
          %s522 = sand.u32 %s147, 1
          %s523 = scalar_lea.sflag [#allocation3], %s522
          %s524 = sand.u32 %s147, 1
          %s525 = smul.addr %s524, 8
          %s526 = scalar_lea.vmem [#allocation2], %s525
          %s528 = ssub.s32 128, 128
          %529 = vsyncadd %s523, %s528
          %s530 = smul.addr %s33, 128
          %s531 = scalar_lea.hbm %s4, %s530
          %s533 = sshll.u32 %s526, 4
          %s534 = int_to_ptr.vmem [resolvable:$true] %s533
          %536 = dma.hbm_to_vmem [thread:$0]  %s531, 128, %s534, %s523
        $region68: #{tpu_custom_call.1} parent=47 // pred_fallthru
          _
        // Predicated region
        $region69: #{tpu_custom_call.1} parent=47 // pred_check
          %p537 = pneg %p183
        $region70: #{tpu_custom_call.1} parent=47 // pred_check_branch
          %539 = sbr.rel (%p537) target = $region72
        $region71: #{tpu_custom_call.1} parent=47 // pred_region
          %p540 = scmp.lt.s32.totalorder %s33, 1
          %s541 = scalar_select %p540, %s33, 1
          %s542 = scalar_lea.vmem %s5, %s541
        $region72: #{tpu_custom_call.1} parent=47 // pred_fallthru
          _
      $region48: #{tpu_custom_call.1} parent=5 // pred_fallthru
        _
      %p543 = scmp.le.s32.totalorder 1, %s33
      %p544 = scmp.lt.s32.totalorder %s33, 3
      %p545 = pnand %p543, %p544
      %p546 = pneg %p545
      // Predicated region
      $region73: #{tpu_custom_call.1} parent=5 // pred_check
        _
      $region74: #{tpu_custom_call.1} parent=5 // pred_check_branch
        %548 = sbr.rel (%p545) target = $region76
      $region75: #{tpu_custom_call.1} parent=5 // pred_region
        %s549 = ssub.s32 %s33, 1
        %s550 = sand.u32 %s150, 1
        %s551 = scalar_lea.sflag [#allocation3], %s550
        %s552 = sand.u32 %s150, 1
        %s553 = smul.addr %s552, 8
        %s554 = scalar_lea.vmem [#allocation2], %s553
        // Predicated region
        $region77: #{tpu_custom_call.1} parent=75 // pred_check
          %p555 = pneg %p163
        $region78: #{tpu_custom_call.1} parent=75 // pred_check_branch
          %557 = sbr.rel (%p555) target = $region80
        $region79: #{tpu_custom_call.1} parent=75 // pred_region
          %558 = dma.done %s551, 128
        $region80: #{tpu_custom_call.1} parent=75 // pred_fallthru
          _
        // Predicated region
        $region81: #{tpu_custom_call.1} parent=75 // pred_check
          %p559 = pneg %p210
        $region82: #{tpu_custom_call.1} parent=75 // pred_check_branch
          %561 = sbr.rel (%p559) target = $region84
        $region83: #{tpu_custom_call.1} parent=75 // pred_region
          %562 = dma.done [#allocation6], 4096
        $region84: #{tpu_custom_call.1} parent=75 // pred_fallthru
          _
        // Predicated region
        $region85: #{tpu_custom_call.1} parent=75 // pred_check
          %p563 = pneg %p294
        $region86: #{tpu_custom_call.1} parent=75 // pred_check_branch
          %565 = sbr.rel (%p563) target = $region88
        $region87: #{tpu_custom_call.1} parent=75 // pred_region
          %566 = dma.done [#allocation6], 4096
        $region88: #{tpu_custom_call.1} parent=75 // pred_fallthru
          _
        // Predicated region
        $region89: #{tpu_custom_call.1} parent=75 // pred_check
          %p567 = pneg %p336
        $region90: #{tpu_custom_call.1} parent=75 // pred_check_branch
          %569 = sbr.rel (%p567) target = $region92
        $region91: #{tpu_custom_call.1} parent=75 // pred_region
          %570 = dma.done [#allocation9], 4096
        $region92: #{tpu_custom_call.1} parent=75 // pred_fallthru
          _
        // Predicated region
        $region93: #{tpu_custom_call.1} parent=75 // pred_check
          %p571 = pneg %p357
        $region94: #{tpu_custom_call.1} parent=75 // pred_check_branch
          %573 = sbr.rel (%p571) target = $region96
        $region95: #{tpu_custom_call.1} parent=75 // pred_region
          %574 = dma.done [#allocation9], 2048
        $region96: #{tpu_custom_call.1} parent=75 // pred_fallthru
          _
        %p575 = scmp.lt.s32.totalorder %s38, 1
        %s576 = scalar_select %p575, %s38, 1
        %s577 = smul.addr %s576, 8
        %s578 = scalar_lea.vmem %s0, %s577
        %p579 = pneg %p59
        %p580 = pneg %p56
        %p581 = scmp.lt.s32.totalorder %s38, 1
        %s582 = scalar_select %p581, %s38, 1
        %s583 = smul.addr %s582, 8
        %s584 = scalar_lea.vmem %s1, %s583
        %p585 = pneg %p85
        %p586 = pneg %p82
        %p587 = scmp.lt.s32.totalorder %s38, 1
        %s588 = scalar_select %p587, %s38, 1
        %s589 = smul.addr %s588, 8
        %s590 = scalar_lea.vmem %s2, %s589
        %p591 = pneg %p111
        %p592 = pneg %p108
        %p593 = scmp.lt.s32.totalorder %s38, 1
        %s594 = scalar_select %p593, %s38, 1
        %s595 = scalar_lea.vmem %s3, %s594
        %p596 = pneg %p137
        %p597 = pneg %p134
        %s598 = sand.u32 %s150, 1
        %s599 = scalar_lea.sflag [#allocation3], %s598
        %s600 = sand.u32 %s150, 1
        %s601 = smul.addr %s600, 8
        %s602 = scalar_lea.vmem [#allocation2], %s601
        %p603 = pneg %p163
        %p604 = pneg %p160
        %p605 = scmp.lt.s32.totalorder %s38, 1
        %s606 = scalar_select %p605, %s38, 1
        %s607 = scalar_lea.vmem %s5, %s606
        %p608 = pneg %p189
        %p609 = pneg %p186
        %p610 = pneg %p210
        %p611 = pneg %p207
        %p612 = pneg %p231
        %p613 = pneg %p228
        %p614 = pneg %p252
        %p615 = pneg %p249
        %p616 = pneg %p273
        %p617 = pneg %p270
        %p618 = pneg %p294
        %p619 = pneg %p291
        %p620 = pneg %p315
        %p621 = pneg %p312
        %p622 = pneg %p336
        %p623 = pneg %p333
        %p624 = pneg %p357
        %p625 = pneg %p354
        %p626 = pneg %p383
        %p627 = pneg %p380
        %s628 = sand.u32 %s370, 1
        %s629 = scalar_lea.sflag [#allocation4], %s628
        %s630 = sand.u32 %s370, 1
        %s631 = smul.addr %s630, 8
        %s632 = scalar_lea.vmem [#allocation11], %s631
        %p633 = pneg %p409
        %p634 = pneg %p406
        %s635 = sand.u32 %s396, 1
        %s636 = scalar_lea.sflag [#allocation13], %s635
        %s637 = sand.u32 %s396, 1
        %s638 = smul.addr %s637, 8
        %s639 = scalar_lea.vmem [#allocation12], %s638
        %p640 = scmp.lt.s32.totalorder %s38, 1
        %s641 = scalar_select %p640, %s38, 1
        %s642 = smul.addr %s641, 8
        %s643 = scalar_lea.vmem %s0, %s642
        %p644 = scmp.lt.s32.totalorder %s38, 1
        %s645 = scalar_select %p644, %s38, 1
        %s646 = smul.addr %s645, 8
        %s647 = scalar_lea.vmem %s1, %s646
        %p648 = scmp.lt.s32.totalorder %s38, 1
        %s649 = scalar_select %p648, %s38, 1
        %s650 = smul.addr %s649, 8
        %s651 = scalar_lea.vmem %s2, %s650
        %p652 = scmp.lt.s32.totalorder %s38, 1
        %s653 = scalar_select %p652, %s38, 1
        %s654 = scalar_lea.vmem %s3, %s653
        %p655 = scmp.lt.s32.totalorder %s38, 1
        %s656 = scalar_select %p655, %s38, 1
        %s657 = scalar_lea.vmem %s5, %s656
        %v658 = vld [vmem:[%s643] sm:$0xff]
        %v659 = vld [vmem:[%s647] sm:$0xff]
        %v660 = vld [vmem:[%s651] sm:$0xff]
        %v661 = vld [vmem:[%s654] sm:$0x1]
        %v662 = vld [vmem:[%s554] sm:$0xff]
        %v663 = vld [vmem:[%s657] sm:$0x1]
        %664 = vmatprep.subr.mxu0 0.0
        %665 = vmatpush1.xpose.msra.mxu0 0.0
        %666 = vmatprep.subr.mxu0 0.0
        %667 = vmatpush1.xpose.msra.mxu0 0.0
        %668 = vmatprep.subr.mxu0 0.0
        %669 = vmatpush1.xpose.msra.mxu0 0.0
        %670 = vmatprep.subr.mxu0 0.0
        %671 = vmatpush1.xpose.msra.mxu0 0.0
        %672 = vmatprep.subr.mxu0 0.0
        %673 = vmatpush1.xpose.msra.mxu0 0.0
        %674 = vmatprep.subr.mxu0 0.0
        %675 = vmatpush1.xpose.msra.mxu0 0.0
        %676 = vmatprep.subr.mxu0 0.0
        %677 = vmatpush1.xpose.msra.mxu0 0.0
        %678 = vmatprep.subr.mxu0 0.0
        %679 = vmatpush1.xpose.msra.mxu0 0.0
        %680 = vmatprep.subr.mxu0 0.0
        %681 = vmatpush1.xpose.msra.mxu0 0.0
        %682 = vmatprep.subr.mxu0 0.0
        %683 = vmatpush1.xpose.msra.mxu0 0.0
        %684 = vmatprep.subr.mxu0 0.0
        %685 = vmatpush1.xpose.msra.mxu0 0.0
        %686 = vmatprep.subr.mxu0 0.0
        %687 = vmatpush1.xpose.msra.mxu0 0.0
        %688 = vmatprep.subr.mxu0 0.0
        %689 = vmatpush1.xpose.msra.mxu0 0.0
        %690 = vmatprep.subr.mxu0 0.0
        %691 = vmatpush1.xpose.msra.mxu0 0.0
        %692 = vmatprep.subr.mxu0 0.0
        %693 = vmatpush1.xpose.msra.mxu0 0.0
        %694 = vmatprep.subr.mxu0 0.0
        %695 = vmatpush1.xpose.msra.mxu0 %v659
        %696 = vmatprep.subr.mxu0 0.0
        %697 = vmatpush2.xpose.msra.mxu0 0.0
        %698 = vmatprep.subr.mxu0 0.0
        %699 = vmatpush2.xpose.msra.mxu0 0.0
        %700 = vmatprep.subr.mxu0 0.0
        %701 = vmatpush2.xpose.msra.mxu0 0.0
        %702 = vmatprep.subr.mxu0 0.0
        %703 = vmatpush2.xpose.msra.mxu0 0.0
        %704 = vmatprep.subr.mxu0 0.0
        %705 = vmatpush2.xpose.msra.mxu0 0.0
        %706 = vmatprep.subr.mxu0 0.0
        %707 = vmatpush2.xpose.msra.mxu0 0.0
        %708 = vmatprep.subr.mxu0 0.0
        %709 = vmatpush2.xpose.msra.mxu0 0.0
        %710 = vmatprep.subr.mxu0 0.0
        %711 = vmatpush2.xpose.msra.mxu0 0.0
        %712 = vmatprep.subr.mxu0 0.0
        %713 = vmatpush2.xpose.msra.mxu0 0.0
        %714 = vmatprep.subr.mxu0 0.0
        %715 = vmatpush2.xpose.msra.mxu0 0.0
        %716 = vmatprep.subr.mxu0 0.0
        %717 = vmatpush2.xpose.msra.mxu0 0.0
        %718 = vmatprep.subr.mxu0 0.0
        %719 = vmatpush2.xpose.msra.mxu0 0.0
        %720 = vmatprep.subr.mxu0 0.0
        %721 = vmatpush2.xpose.msra.mxu0 0.0
        %722 = vmatprep.subr.mxu0 0.0
        %723 = vmatpush2.xpose.msra.mxu0 0.0
        %724 = vmatprep.subr.mxu0 0.0
        %725 = vmatpush2.xpose.msra.mxu0 0.0
        %726 = vmatprep.subr.mxu0 0.0
        %727 = vmatpush2.xpose.msra.mxu0 0.0
        %728 = vmatprep.mubr.f32.mxu0 0.0
        %729 = vmatmul.mubr.f32.gmra.mxu0 %v659
        %v730 = vpop.f32.mrf.mxu0
        %v731 = vadd.f32 0.0, %v730
        %v732 = vpop.f32.mrf.mxu0
        %733 = vdwg.mxu0
        %v734 = vmul.f32 %v659, %v659
        %735 = vadd.xlane.f32.xlu0 %v734
        %v736 = vpop.xlane.xlu0 %735
        %v738 = vlaneseq
        %v739 = vand.u32 %v738, 127
        %v740 = vlaneseq
        %v741 = vshrl.u32 %v740, 7
        %v742 = vsub.s32 %v739, %v741
        %v743 = vrot.slane %v736, %v742
        %vm744 = vcmask 1041409
        %vm745 = vcmask 1042434
        %v746 = vsel %vm745, %v743, %v743
        %vm747 = vcmask 1043459
        %v748 = vsel %vm747, %v743, %v746
        %vm749 = vcmask 1044484
        %v750 = vsel %vm749, %v743, %v748
        %vm751 = vcmask 1045509
        %v752 = vsel %vm751, %v743, %v750
        %vm753 = vcmask 1046534
        %v754 = vsel %vm753, %v743, %v752
        %vm755 = vcmask 1047559
        %v756 = vsel %vm755, %v743, %v754
        %v758 = vadd.f32 %v736, %v756
        %v759 = vmul.f32 %v731, 2.0
        %v760 = vsub.f32 %v758, %v759
        %v761 = vmax.f32 %v760, 0.0
        %v762 = vld [vmem:[#allocation5] sm:$0xff]
        %v763 = vld [vmem:[#allocation5 + $0x8] sm:$0xff]
        %v764 = vld [vmem:[#allocation5 + $0x10] sm:$0xff]
        %v765 = vld [vmem:[#allocation5 + $0x18] sm:$0xff]
        %v766 = vld [vmem:[#allocation5 + $0x20] sm:$0xff]
        %v767 = vld [vmem:[#allocation5 + $0x28] sm:$0xff]
        %v768 = vld [vmem:[#allocation5 + $0x30] sm:$0xff]
        %v769 = vld [vmem:[#allocation5 + $0x38] sm:$0xff]
        %v770 = vld [vmem:[#allocation5 + $0x40] sm:$0xff]
        %v771 = vld [vmem:[#allocation5 + $0x48] sm:$0xff]
        %v772 = vld [vmem:[#allocation5 + $0x50] sm:$0xff]
        %v773 = vld [vmem:[#allocation5 + $0x58] sm:$0xff]
        %v774 = vld [vmem:[#allocation5 + $0x60] sm:$0xff]
        %v775 = vld [vmem:[#allocation5 + $0x68] sm:$0xff]
        %v776 = vld [vmem:[#allocation5 + $0x70] sm:$0xff]
        %v777 = vld [vmem:[#allocation5 + $0x78] sm:$0xff]
        %v778 = vld [vmem:[#allocation5 + $0x80] sm:$0xff]
        %v779 = vld [vmem:[#allocation5 + $0x88] sm:$0xff]
        %v780 = vld [vmem:[#allocation5 + $0x90] sm:$0xff]
        %v781 = vld [vmem:[#allocation5 + $0x98] sm:$0xff]
        %v782 = vld [vmem:[#allocation5 + $0xa0] sm:$0xff]
        %v783 = vld [vmem:[#allocation5 + $0xa8] sm:$0xff]
        %v784 = vld [vmem:[#allocation5 + $0xb0] sm:$0xff]
        %v785 = vld [vmem:[#allocation5 + $0xb8] sm:$0xff]
        %v786 = vld [vmem:[#allocation5 + $0xc0] sm:$0xff]
        %v787 = vld [vmem:[#allocation5 + $0xc8] sm:$0xff]
        %v788 = vld [vmem:[#allocation5 + $0xd0] sm:$0xff]
        %v789 = vld [vmem:[#allocation5 + $0xd8] sm:$0xff]
        %v790 = vld [vmem:[#allocation5 + $0xe0] sm:$0xff]
        %v791 = vld [vmem:[#allocation5 + $0xe8] sm:$0xff]
        %v792 = vld [vmem:[#allocation5 + $0xf0] sm:$0xff]
        %v793 = vld [vmem:[#allocation5 + $0xf8] sm:$0xff]
        %794 = vmatprep.subr.mxu0 %v793
        %795 = vmatpush1.msra.mxu0 %v792
        %796 = vmatprep.subr.mxu0 %v791
        %797 = vmatpush1.msra.mxu0 %v790
        %798 = vmatprep.subr.mxu0 %v789
        %799 = vmatpush1.msra.mxu0 %v788
        %800 = vmatprep.subr.mxu0 %v787
        %801 = vmatpush1.msra.mxu0 %v786
        %802 = vmatprep.subr.mxu0 %v785
        %803 = vmatpush1.msra.mxu0 %v784
        %804 = vmatprep.subr.mxu0 %v783
        %805 = vmatpush1.msra.mxu0 %v782
        %806 = vmatprep.subr.mxu0 %v781
        %807 = vmatpush1.msra.mxu0 %v780
        %808 = vmatprep.subr.mxu0 %v779
        %809 = vmatpush1.msra.mxu0 %v778
        %810 = vmatprep.subr.mxu0 %v777
        %811 = vmatpush1.msra.mxu0 %v776
        %812 = vmatprep.subr.mxu0 %v775
        %813 = vmatpush1.msra.mxu0 %v774
        %814 = vmatprep.subr.mxu0 %v773
        %815 = vmatpush1.msra.mxu0 %v772
        %816 = vmatprep.subr.mxu0 %v771
        %817 = vmatpush1.msra.mxu0 %v770
        %818 = vmatprep.subr.mxu0 %v769
        %819 = vmatpush1.msra.mxu0 %v768
        %820 = vmatprep.subr.mxu0 %v767
        %821 = vmatpush1.msra.mxu0 %v766
        %822 = vmatprep.subr.mxu0 %v765
        %823 = vmatpush1.msra.mxu0 %v764
        %824 = vmatprep.subr.mxu0 %v763
        %825 = vmatpush1.msra.mxu0 %v762
        %826 = vmatprep.subr.mxu0 0.0
        %827 = vmatpush2.msra.mxu0 0.0
        %828 = vmatprep.subr.mxu0 0.0
        %829 = vmatpush2.msra.mxu0 0.0
        %830 = vmatprep.subr.mxu0 0.0
        %831 = vmatpush2.msra.mxu0 0.0
        %832 = vmatprep.subr.mxu0 0.0
        %833 = vmatpush2.msra.mxu0 0.0
        %834 = vmatprep.subr.mxu0 0.0
        %835 = vmatpush2.msra.mxu0 0.0
        %836 = vmatprep.subr.mxu0 0.0
        %837 = vmatpush2.msra.mxu0 0.0
        %838 = vmatprep.subr.mxu0 0.0
        %839 = vmatpush2.msra.mxu0 0.0
        %840 = vmatprep.subr.mxu0 0.0
        %841 = vmatpush2.msra.mxu0 0.0
        %842 = vmatprep.subr.mxu0 0.0
        %843 = vmatpush2.msra.mxu0 0.0
        %844 = vmatprep.subr.mxu0 0.0
        %845 = vmatpush2.msra.mxu0 0.0
        %846 = vmatprep.subr.mxu0 0.0
        %847 = vmatpush2.msra.mxu0 0.0
        %848 = vmatprep.subr.mxu0 0.0
        %849 = vmatpush2.msra.mxu0 0.0
        %850 = vmatprep.subr.mxu0 0.0
        %851 = vmatpush2.msra.mxu0 0.0
        %852 = vmatprep.subr.mxu0 0.0
        %853 = vmatpush2.msra.mxu0 0.0
        %854 = vmatprep.subr.mxu0 0.0
        %855 = vmatpush2.msra.mxu0 0.0
        %856 = vmatprep.subr.mxu0 0.0
        %857 = vmatpush2.msra.mxu0 0.0
        %858 = vmatprep.mubr.f32.mxu0 0.0
        %859 = vmatmul.mubr.f32.gmra.mxu0 %v658
        %v860 = vpop.f32.mrf.mxu0
        %v861 = vadd.f32 0.0, %v860
        %v862 = vpop.f32.mrf.mxu0
        %v863 = vadd.f32 0.0, %v862
        %864 = vdwg.mxu0
        %v866 = vcombine.high %v861, %v861
        %v868 = vunpack.c.l.s4 1966171168
        %v869 = vunpack.c.0.s8 %v868
        %v870 = vlaneseq
        %v871 = vshrl.u32 %v870, 7
        %v872 = vsub.s32 %v869, %v871
        %v873 = vrot.slane %v861, %v872
        %v875 = vunpack.c.l.s4 1966171168
        %v876 = vunpack.c.0.s8 %v875
        %v877 = vlaneseq
        %v878 = vshrl.u32 %v877, 7
        %v879 = vsub.s32 %v876, %v878
        %v880 = vrot.slane %v866, %v879
        %v881 = vcombine.high %v873, %v873
        %v882 = vcombine.high %v880, %v880
        %v884 = vunpack.c.l.s4 1966171168
        %v885 = vunpack.c.0.s8 %v884
        %v886 = vlaneseq
        %v887 = vshrl.u32 %v886, 7
        %v888 = vsub.s32 %v885, %v887
        %v889 = vrot.slane %v873, %v888
        %v891 = vunpack.c.l.s4 1966171168
        %v892 = vunpack.c.0.s8 %v891
        %v893 = vlaneseq
        %v894 = vshrl.u32 %v893, 7
        %v895 = vsub.s32 %v892, %v894
        %v896 = vrot.slane %v880, %v895
        %v898 = vunpack.c.l.s4 1966171168
        %v899 = vunpack.c.0.s8 %v898
        %v900 = vlaneseq
        %v901 = vshrl.u32 %v900, 7
        %v902 = vsub.s32 %v899, %v901
        %v903 = vrot.slane %v881, %v902
        %v905 = vunpack.c.l.s4 1966171168
        %v906 = vunpack.c.0.s8 %v905
        %v907 = vlaneseq
        %v908 = vshrl.u32 %v907, 7
        %v909 = vsub.s32 %v906, %v908
        %v910 = vrot.slane %v882, %v909
        %v911 = vcombine.high %v889, %v889
        %v912 = vcombine.high %v896, %v896
        %v913 = vcombine.high %v903, %v903
        %v914 = vcombine.high %v910, %v910
        %v915 = vlaneseq
        %v916 = vshrl.u32 %v915, 7
        %v917 = vsub.s32 0, %v916
        %v918 = vrot.slane %v889, %v917
        %v919 = vlaneseq
        %v920 = vshrl.u32 %v919, 7
        %v921 = vsub.s32 0, %v920
        %v922 = vrot.slane %v903, %v921
        %v923 = vlaneseq
        %v924 = vshrl.u32 %v923, 7
        %v925 = vsub.s32 0, %v924
        %v926 = vrot.slane %v911, %v925
        %v927 = vlaneseq
        %v928 = vshrl.u32 %v927, 7
        %v929 = vsub.s32 0, %v928
        %v930 = vrot.slane %v913, %v929
        %v931 = vlaneseq
        %v932 = vshrl.u32 %v931, 7
        %v933 = vsub.s32 0, %v932
        %v934 = vrot.slane %v896, %v933
        %v935 = vlaneseq
        %v936 = vshrl.u32 %v935, 7
        %v937 = vsub.s32 0, %v936
        %v938 = vrot.slane %v910, %v937
        %v939 = vlaneseq
        %v940 = vshrl.u32 %v939, 7
        %v941 = vsub.s32 0, %v940
        %v942 = vrot.slane %v912, %v941
        %v943 = vlaneseq
        %v944 = vshrl.u32 %v943, 7
        %v945 = vsub.s32 0, %v944
        %v946 = vrot.slane %v914, %v945
        %v955 = vadd.f32 %v918, %v863
        %v956 = vadd.f32 %v922, %v863
        %v957 = vadd.f32 %v926, %v863
        %v958 = vadd.f32 %v930, %v863
        %v959 = vadd.f32 %v934, %v863
        %v960 = vadd.f32 %v938, %v863
        %v961 = vadd.f32 %v942, %v863
        %v962 = vadd.f32 %v946, %v863
        %v963 = vlaneseq
        %v964 = vshrl.u32 %v963, 7
        %v965 = vsub.s32 0, %v964
        %v966 = vrot.slane %v761, %v965
        %968 = vbcast.lane.b32.xlu0 %v966, 256
        %v969 = vpop.permute.xlu0 %968
        %v970 = vlaneseq
        %v971 = vshrl.u32 %v970, 7
        %v972 = vsub.s32 1, %v971
        %v973 = vrot.slane %v761, %v972
        %975 = vbcast.lane.b32.xlu0 %v973, 256
        %v976 = vpop.permute.xlu0 %975
        %v977 = vlaneseq
        %v978 = vshrl.u32 %v977, 7
        %v979 = vsub.s32 2, %v978
        %v980 = vrot.slane %v761, %v979
        %982 = vbcast.lane.b32.xlu0 %v980, 256
        %v983 = vpop.permute.xlu0 %982
        %v984 = vlaneseq
        %v985 = vshrl.u32 %v984, 7
        %v986 = vsub.s32 3, %v985
        %v987 = vrot.slane %v761, %v986
        %989 = vbcast.lane.b32.xlu0 %v987, 256
        %v990 = vpop.permute.xlu0 %989
        %v991 = vlaneseq
        %v992 = vshrl.u32 %v991, 7
        %v993 = vsub.s32 4, %v992
        %v994 = vrot.slane %v761, %v993
        %996 = vbcast.lane.b32.xlu0 %v994, 256
        %v997 = vpop.permute.xlu0 %996
        %v998 = vlaneseq
        %v999 = vshrl.u32 %v998, 7
        %v1000 = vsub.s32 5, %v999
        %v1001 = vrot.slane %v761, %v1000
        %1003 = vbcast.lane.b32.xlu0 %v1001, 256
        %v1004 = vpop.permute.xlu0 %1003
        %v1005 = vlaneseq
        %v1006 = vshrl.u32 %v1005, 7
        %v1007 = vsub.s32 6, %v1006
        %v1008 = vrot.slane %v761, %v1007
        %1010 = vbcast.lane.b32.xlu0 %v1008, 256
        %v1011 = vpop.permute.xlu0 %1010
        %v1012 = vlaneseq
        %v1013 = vshrl.u32 %v1012, 7
        %v1014 = vsub.s32 7, %v1013
        %v1015 = vrot.slane %v761, %v1014
        %1017 = vbcast.lane.b32.xlu0 %v1015, 256
        %v1018 = vpop.permute.xlu0 %1017
        %v1019 = vld [vmem:[%s7] sm:$0x1]
        %v1021 = vlaneseq
        %v1022 = vshrl.u32 %v1021, 7
        %v1023 = vsub.s32 0, %v1022
        %v1024 = vrot.slane %v1019, %v1023
        %v1026 = vmul.f32 %v969, %v1024
        %v1027 = vmul.f32 %v976, %v1024
        %v1028 = vmul.f32 %v983, %v1024
        %v1029 = vmul.f32 %v990, %v1024
        %v1030 = vmul.f32 %v997, %v1024
        %v1031 = vmul.f32 %v1004, %v1024
        %v1032 = vmul.f32 %v1011, %v1024
        %v1033 = vmul.f32 %v1018, %v1024
        %v1034 = vadd.f32 %v955, %v1026
        %v1035 = vadd.f32 %v956, %v1027
        %v1036 = vadd.f32 %v957, %v1028
        %v1037 = vadd.f32 %v958, %v1029
        %v1038 = vadd.f32 %v959, %v1030
        %v1039 = vadd.f32 %v960, %v1031
        %v1040 = vadd.f32 %v961, %v1032
        %v1041 = vadd.f32 %v962, %v1033
        %v1042 = vlaneseq
        %v1043 = vshrl.u32 %v1042, 7
        %v1044 = vsub.s32 0, %v1043
        %v1045 = vrot.slane %v662, %v1044
        %1047 = vbcast.lane.b32.xlu0 %v1045, 256
        %v1048 = vpop.permute.xlu0 %1047
        %v1049 = vlaneseq
        %v1050 = vshrl.u32 %v1049, 7
        %v1051 = vsub.s32 1, %v1050
        %v1052 = vrot.slane %v662, %v1051
        %1054 = vbcast.lane.b32.xlu0 %v1052, 256
        %v1055 = vpop.permute.xlu0 %1054
        %v1056 = vlaneseq
        %v1057 = vshrl.u32 %v1056, 7
        %v1058 = vsub.s32 2, %v1057
        %v1059 = vrot.slane %v662, %v1058
        %1061 = vbcast.lane.b32.xlu0 %v1059, 256
        %v1062 = vpop.permute.xlu0 %1061
        %v1063 = vlaneseq
        %v1064 = vshrl.u32 %v1063, 7
        %v1065 = vsub.s32 3, %v1064
        %v1066 = vrot.slane %v662, %v1065
        %1068 = vbcast.lane.b32.xlu0 %v1066, 256
        %v1069 = vpop.permute.xlu0 %1068
        %v1070 = vlaneseq
        %v1071 = vshrl.u32 %v1070, 7
        %v1072 = vsub.s32 4, %v1071
        %v1073 = vrot.slane %v662, %v1072
        %1075 = vbcast.lane.b32.xlu0 %v1073, 256
        %v1076 = vpop.permute.xlu0 %1075
        %v1077 = vlaneseq
        %v1078 = vshrl.u32 %v1077, 7
        %v1079 = vsub.s32 5, %v1078
        %v1080 = vrot.slane %v662, %v1079
        %1082 = vbcast.lane.b32.xlu0 %v1080, 256
        %v1083 = vpop.permute.xlu0 %1082
        %v1084 = vlaneseq
        %v1085 = vshrl.u32 %v1084, 7
        %v1086 = vsub.s32 6, %v1085
        %v1087 = vrot.slane %v662, %v1086
        %1089 = vbcast.lane.b32.xlu0 %v1087, 256
        %v1090 = vpop.permute.xlu0 %1089
        %v1091 = vlaneseq
        %v1092 = vshrl.u32 %v1091, 7
        %v1093 = vsub.s32 7, %v1092
        %v1094 = vrot.slane %v662, %v1093
        %1096 = vbcast.lane.b32.xlu0 %v1094, 256
        %v1097 = vpop.permute.xlu0 %1096
        %v1098 = vld [vmem:[%s8] sm:$0x1]
        %v1100 = vlaneseq
        %v1101 = vshrl.u32 %v1100, 7
        %v1102 = vsub.s32 0, %v1101
        %v1103 = vrot.slane %v1098, %v1102
        %v1105 = vmul.f32 %v1048, %v1103
        %v1106 = vmul.f32 %v1055, %v1103
        %v1107 = vmul.f32 %v1062, %v1103
        %v1108 = vmul.f32 %v1069, %v1103
        %v1109 = vmul.f32 %v1076, %v1103
        %v1110 = vmul.f32 %v1083, %v1103
        %v1111 = vmul.f32 %v1090, %v1103
        %v1112 = vmul.f32 %v1097, %v1103
        %v1113 = vadd.f32 %v1034, %v1105
        %v1114 = vadd.f32 %v1035, %v1106
        %v1115 = vadd.f32 %v1036, %v1107
        %v1116 = vadd.f32 %v1037, %v1108
        %v1117 = vadd.f32 %v1038, %v1109
        %v1118 = vadd.f32 %v1039, %v1110
        %v1119 = vadd.f32 %v1040, %v1111
        %v1120 = vadd.f32 %v1041, %v1112
        %v1121 = vsub.f32 0.0, %v1113
        %v1122 = vsub.f32 0.0, %v1114
        %v1123 = vsub.f32 0.0, %v1115
        %v1124 = vsub.f32 0.0, %v1116
        %v1125 = vsub.f32 0.0, %v1117
        %v1126 = vsub.f32 0.0, %v1118
        %v1127 = vsub.f32 0.0, %v1119
        %v1128 = vsub.f32 0.0, %v1120
        %v1129 = vmul.f32 %v1121, 1.442695
        %v1130 = vpow.pop %v1129
        %v1131 = vmul.f32 %v1122, 1.442695
        %v1132 = vpow.pop %v1131
        %v1133 = vmul.f32 %v1123, 1.442695
        %v1134 = vpow.pop %v1133
        %v1135 = vmul.f32 %v1124, 1.442695
        %v1136 = vpow.pop %v1135
        %v1137 = vmul.f32 %v1125, 1.442695
        %v1138 = vpow.pop %v1137
        %v1139 = vmul.f32 %v1126, 1.442695
        %v1140 = vpow.pop %v1139
        %v1141 = vmul.f32 %v1127, 1.442695
        %v1142 = vpow.pop %v1141
        %v1143 = vmul.f32 %v1128, 1.442695
        %v1144 = vpow.pop %v1143
        %v1145 = vadd.f32 %v1130, 1.0
        %v1146 = vadd.f32 %v1132, 1.0
        %v1147 = vadd.f32 %v1134, 1.0
        %v1148 = vadd.f32 %v1136, 1.0
        %v1149 = vadd.f32 %v1138, 1.0
        %v1150 = vadd.f32 %v1140, 1.0
        %v1151 = vadd.f32 %v1142, 1.0
        %v1152 = vadd.f32 %v1144, 1.0
        %v1153 = vrcp.pop %v1145
        %v1154 = vrcp.pop %v1146
        %v1155 = vrcp.pop %v1147
        %v1156 = vrcp.pop %v1148
        %v1157 = vrcp.pop %v1149
        %v1158 = vrcp.pop %v1150
        %v1159 = vrcp.pop %v1151
        %v1160 = vrcp.pop %v1152
        %v1161 = vmul.f32 %v1113, %v1153
        %v1162 = vmul.f32 %v1114, %v1154
        %v1163 = vmul.f32 %v1115, %v1155
        %v1164 = vmul.f32 %v1116, %v1156
        %v1165 = vmul.f32 %v1117, %v1157
        %v1166 = vmul.f32 %v1118, %v1158
        %v1167 = vmul.f32 %v1119, %v1159
        %v1168 = vmul.f32 %v1120, %v1160
        %v1169 = vld [vmem:[%s9] sm:$0xff]
        %v1170 = vld [vmem:[%s9 + $0x8] sm:$0xff]
        %v1171 = vld [vmem:[%s9 + $0x10] sm:$0xff]
        %v1172 = vld [vmem:[%s9 + $0x18] sm:$0xff]
        %v1173 = vld [vmem:[%s9 + $0x20] sm:$0xff]
        %v1174 = vld [vmem:[%s9 + $0x28] sm:$0xff]
        %v1175 = vld [vmem:[%s9 + $0x30] sm:$0xff]
        %v1176 = vld [vmem:[%s9 + $0x38] sm:$0xff]
        %v1177 = vld [vmem:[%s9 + $0x40] sm:$0xff]
        %v1178 = vld [vmem:[%s9 + $0x48] sm:$0xff]
        %v1179 = vld [vmem:[%s9 + $0x50] sm:$0xff]
        %v1180 = vld [vmem:[%s9 + $0x58] sm:$0xff]
        %v1181 = vld [vmem:[%s9 + $0x60] sm:$0xff]
        %v1182 = vld [vmem:[%s9 + $0x68] sm:$0xff]
        %v1183 = vld [vmem:[%s9 + $0x70] sm:$0xff]
        %v1184 = vld [vmem:[%s9 + $0x78] sm:$0xff]
        %1185 = vmatprep.subr.mxu0 0.0
        %1186 = vmatpush1.msra.mxu0 %v1184
        %1187 = vmatprep.subr.mxu0 0.0
        %1188 = vmatpush1.msra.mxu0 %v1183
        %1189 = vmatprep.subr.mxu0 0.0
        %1190 = vmatpush1.msra.mxu0 %v1182
        %1191 = vmatprep.subr.mxu0 0.0
        %1192 = vmatpush1.msra.mxu0 %v1181
        %1193 = vmatprep.subr.mxu0 0.0
        %1194 = vmatpush1.msra.mxu0 %v1180
        %1195 = vmatprep.subr.mxu0 0.0
        %1196 = vmatpush1.msra.mxu0 %v1179
        %1197 = vmatprep.subr.mxu0 0.0
        %1198 = vmatpush1.msra.mxu0 %v1178
        %1199 = vmatprep.subr.mxu0 0.0
        %1200 = vmatpush1.msra.mxu0 %v1177
        %1201 = vmatprep.subr.mxu0 0.0
        %1202 = vmatpush1.msra.mxu0 %v1176
        %1203 = vmatprep.subr.mxu0 0.0
        %1204 = vmatpush1.msra.mxu0 %v1175
        %1205 = vmatprep.subr.mxu0 0.0
        %1206 = vmatpush1.msra.mxu0 %v1174
        %1207 = vmatprep.subr.mxu0 0.0
        %1208 = vmatpush1.msra.mxu0 %v1173
        %1209 = vmatprep.subr.mxu0 0.0
        %1210 = vmatpush1.msra.mxu0 %v1172
        %1211 = vmatprep.subr.mxu0 0.0
        %1212 = vmatpush1.msra.mxu0 %v1171
        %1213 = vmatprep.subr.mxu0 0.0
        %1214 = vmatpush1.msra.mxu0 %v1170
        %1215 = vmatprep.subr.mxu0 0.0
        %1216 = vmatpush1.msra.mxu0 %v1169
        %1217 = vmatprep.subr.mxu0 0.0
        %1218 = vmatpush2.msra.mxu0 0.0
        %1219 = vmatprep.subr.mxu0 0.0
        %1220 = vmatpush2.msra.mxu0 0.0
        %1221 = vmatprep.subr.mxu0 0.0
        %1222 = vmatpush2.msra.mxu0 0.0
        %1223 = vmatprep.subr.mxu0 0.0
        %1224 = vmatpush2.msra.mxu0 0.0
        %1225 = vmatprep.subr.mxu0 0.0
        %1226 = vmatpush2.msra.mxu0 0.0
        %1227 = vmatprep.subr.mxu0 0.0
        %1228 = vmatpush2.msra.mxu0 0.0
        %1229 = vmatprep.subr.mxu0 0.0
        %1230 = vmatpush2.msra.mxu0 0.0
        %1231 = vmatprep.subr.mxu0 0.0
        %1232 = vmatpush2.msra.mxu0 0.0
        %1233 = vmatprep.subr.mxu0 0.0
        %1234 = vmatpush2.msra.mxu0 0.0
        %1235 = vmatprep.subr.mxu0 0.0
        %1236 = vmatpush2.msra.mxu0 0.0
        %1237 = vmatprep.subr.mxu0 0.0
        %1238 = vmatpush2.msra.mxu0 0.0
        %1239 = vmatprep.subr.mxu0 0.0
        %1240 = vmatpush2.msra.mxu0 0.0
        %1241 = vmatprep.subr.mxu0 0.0
        %1242 = vmatpush2.msra.mxu0 0.0
        %1243 = vmatprep.subr.mxu0 0.0
        %1244 = vmatpush2.msra.mxu0 0.0
        %1245 = vmatprep.subr.mxu0 0.0
        %1246 = vmatpush2.msra.mxu0 0.0
        %1247 = vmatprep.subr.mxu0 0.0
        %1248 = vmatpush2.msra.mxu0 0.0
        %1249 = vmatprep.mubr.f32.mxu0 0.0
        %1250 = vmatmul.mubr.f32.gmra.mxu0 %v1161
        %v1251 = vpop.f32.mrf.mxu0
        %v1252 = vadd.f32 0.0, %v1251
        %v1253 = vpop.f32.mrf.mxu0
        %1254 = vmatprep.mubr.f32.mxu0 0.0
        %1255 = vmatmul.mubr.f32.gmra.mxu0 %v1162
        %v1256 = vpop.f32.mrf.mxu0
        %v1257 = vadd.f32 0.0, %v1256
        %v1258 = vpop.f32.mrf.mxu0
        %1259 = vmatprep.mubr.f32.mxu0 0.0
        %1260 = vmatmul.mubr.f32.gmra.mxu0 %v1163
        %v1261 = vpop.f32.mrf.mxu0
        %v1262 = vadd.f32 0.0, %v1261
        %v1263 = vpop.f32.mrf.mxu0
        %1264 = vmatprep.mubr.f32.mxu0 0.0
        %1265 = vmatmul.mubr.f32.gmra.mxu0 %v1164
        %v1266 = vpop.f32.mrf.mxu0
        %v1267 = vadd.f32 0.0, %v1266
        %v1268 = vpop.f32.mrf.mxu0
        %1269 = vmatprep.mubr.f32.mxu0 0.0
        %1270 = vmatmul.mubr.f32.gmra.mxu0 %v1165
        %v1271 = vpop.f32.mrf.mxu0
        %v1272 = vadd.f32 0.0, %v1271
        %v1273 = vpop.f32.mrf.mxu0
        %1274 = vmatprep.mubr.f32.mxu0 0.0
        %1275 = vmatmul.mubr.f32.gmra.mxu0 %v1166
        %v1276 = vpop.f32.mrf.mxu0
        %v1277 = vadd.f32 0.0, %v1276
        %v1278 = vpop.f32.mrf.mxu0
        %1279 = vmatprep.mubr.f32.mxu0 0.0
        %1280 = vmatmul.mubr.f32.gmra.mxu0 %v1167
        %v1281 = vpop.f32.mrf.mxu0
        %v1282 = vadd.f32 0.0, %v1281
        %v1283 = vpop.f32.mrf.mxu0
        %1284 = vmatprep.mubr.f32.mxu0 0.0
        %1285 = vmatmul.mubr.f32.gmra.mxu0 %v1168
        %v1286 = vpop.f32.mrf.mxu0
        %v1287 = vadd.f32 0.0, %v1286
        %v1288 = vpop.f32.mrf.mxu0
        %1289 = vdwg.mxu0
        %v1290 = vsub.f32 0.0, %v1252
        %v1291 = vsub.f32 0.0, %v1257
        %v1292 = vsub.f32 0.0, %v1262
        %v1293 = vsub.f32 0.0, %v1267
        %v1294 = vsub.f32 0.0, %v1272
        %v1295 = vsub.f32 0.0, %v1277
        %v1296 = vsub.f32 0.0, %v1282
        %v1297 = vsub.f32 0.0, %v1287
        %v1298 = vmul.f32 %v1290, 1.442695
        %v1299 = vpow.pop %v1298
        %v1300 = vmul.f32 %v1291, 1.442695
        %v1301 = vpow.pop %v1300
        %v1302 = vmul.f32 %v1292, 1.442695
        %v1303 = vpow.pop %v1302
        %v1304 = vmul.f32 %v1293, 1.442695
        %v1305 = vpow.pop %v1304
        %v1306 = vmul.f32 %v1294, 1.442695
        %v1307 = vpow.pop %v1306
        %v1308 = vmul.f32 %v1295, 1.442695
        %v1309 = vpow.pop %v1308
        %v1310 = vmul.f32 %v1296, 1.442695
        %v1311 = vpow.pop %v1310
        %v1312 = vmul.f32 %v1297, 1.442695
        %v1313 = vpow.pop %v1312
        %v1314 = vadd.f32 %v1299, 1.0
        %v1315 = vadd.f32 %v1301, 1.0
        %v1316 = vadd.f32 %v1303, 1.0
        %v1317 = vadd.f32 %v1305, 1.0
        %v1318 = vadd.f32 %v1307, 1.0
        %v1319 = vadd.f32 %v1309, 1.0
        %v1320 = vadd.f32 %v1311, 1.0
        %v1321 = vadd.f32 %v1313, 1.0
        %v1322 = vrcp.pop %v1314
        %v1323 = vrcp.pop %v1315
        %v1324 = vrcp.pop %v1316
        %v1325 = vrcp.pop %v1317
        %v1326 = vrcp.pop %v1318
        %v1327 = vrcp.pop %v1319
        %v1328 = vrcp.pop %v1320
        %v1329 = vrcp.pop %v1321
        %v1330 = vmul.f32 %v1252, %v1322
        %v1331 = vmul.f32 %v1257, %v1323
        %v1332 = vmul.f32 %v1262, %v1324
        %v1333 = vmul.f32 %v1267, %v1325
        %v1334 = vmul.f32 %v1272, %v1326
        %v1335 = vmul.f32 %v1277, %v1327
        %v1336 = vmul.f32 %v1282, %v1328
        %v1337 = vmul.f32 %v1287, %v1329
        %v1338 = vld [vmem:[#allocation7] sm:$0xff]
        %v1339 = vld [vmem:[#allocation7 + $0x8] sm:$0xff]
        %v1340 = vld [vmem:[#allocation7 + $0x10] sm:$0xff]
        %v1341 = vld [vmem:[#allocation7 + $0x18] sm:$0xff]
        %v1342 = vld [vmem:[#allocation7 + $0x20] sm:$0xff]
        %v1343 = vld [vmem:[#allocation7 + $0x28] sm:$0xff]
        %v1344 = vld [vmem:[#allocation7 + $0x30] sm:$0xff]
        %v1345 = vld [vmem:[#allocation7 + $0x38] sm:$0xff]
        %v1346 = vld [vmem:[#allocation7 + $0x40] sm:$0xff]
        %v1347 = vld [vmem:[#allocation7 + $0x48] sm:$0xff]
        %v1348 = vld [vmem:[#allocation7 + $0x50] sm:$0xff]
        %v1349 = vld [vmem:[#allocation7 + $0x58] sm:$0xff]
        %v1350 = vld [vmem:[#allocation7 + $0x60] sm:$0xff]
        %v1351 = vld [vmem:[#allocation7 + $0x68] sm:$0xff]
        %v1352 = vld [vmem:[#allocation7 + $0x70] sm:$0xff]
        %v1353 = vld [vmem:[#allocation7 + $0x78] sm:$0xff]
        %v1354 = vld [vmem:[#allocation7 + $0x80] sm:$0xff]
        %v1355 = vld [vmem:[#allocation7 + $0x88] sm:$0xff]
        %v1356 = vld [vmem:[#allocation7 + $0x90] sm:$0xff]
        %v1357 = vld [vmem:[#allocation7 + $0x98] sm:$0xff]
        %v1358 = vld [vmem:[#allocation7 + $0xa0] sm:$0xff]
        %v1359 = vld [vmem:[#allocation7 + $0xa8] sm:$0xff]
        %v1360 = vld [vmem:[#allocation7 + $0xb0] sm:$0xff]
        %v1361 = vld [vmem:[#allocation7 + $0xb8] sm:$0xff]
        %v1362 = vld [vmem:[#allocation7 + $0xc0] sm:$0xff]
        %v1363 = vld [vmem:[#allocation7 + $0xc8] sm:$0xff]
        %v1364 = vld [vmem:[#allocation7 + $0xd0] sm:$0xff]
        %v1365 = vld [vmem:[#allocation7 + $0xd8] sm:$0xff]
        %v1366 = vld [vmem:[#allocation7 + $0xe0] sm:$0xff]
        %v1367 = vld [vmem:[#allocation7 + $0xe8] sm:$0xff]
        %v1368 = vld [vmem:[#allocation7 + $0xf0] sm:$0xff]
        %v1369 = vld [vmem:[#allocation7 + $0xf8] sm:$0xff]
        %1370 = vmatprep.subr.mxu0 %v1369
        %1371 = vmatpush1.msra.mxu0 %v1368
        %1372 = vmatprep.subr.mxu0 %v1367
        %1373 = vmatpush1.msra.mxu0 %v1366
        %1374 = vmatprep.subr.mxu0 %v1365
        %1375 = vmatpush1.msra.mxu0 %v1364
        %1376 = vmatprep.subr.mxu0 %v1363
        %1377 = vmatpush1.msra.mxu0 %v1362
        %1378 = vmatprep.subr.mxu0 %v1361
        %1379 = vmatpush1.msra.mxu0 %v1360
        %1380 = vmatprep.subr.mxu0 %v1359
        %1381 = vmatpush1.msra.mxu0 %v1358
        %1382 = vmatprep.subr.mxu0 %v1357
        %1383 = vmatpush1.msra.mxu0 %v1356
        %1384 = vmatprep.subr.mxu0 %v1355
        %1385 = vmatpush1.msra.mxu0 %v1354
        %1386 = vmatprep.subr.mxu0 %v1353
        %1387 = vmatpush1.msra.mxu0 %v1352
        %1388 = vmatprep.subr.mxu0 %v1351
        %1389 = vmatpush1.msra.mxu0 %v1350
        %1390 = vmatprep.subr.mxu0 %v1349
        %1391 = vmatpush1.msra.mxu0 %v1348
        %1392 = vmatprep.subr.mxu0 %v1347
        %1393 = vmatpush1.msra.mxu0 %v1346
        %1394 = vmatprep.subr.mxu0 %v1345
        %1395 = vmatpush1.msra.mxu0 %v1344
        %1396 = vmatprep.subr.mxu0 %v1343
        %1397 = vmatpush1.msra.mxu0 %v1342
        %1398 = vmatprep.subr.mxu0 %v1341
        %1399 = vmatpush1.msra.mxu0 %v1340
        %1400 = vmatprep.subr.mxu0 %v1339
        %1401 = vmatpush1.msra.mxu0 %v1338
        %1402 = vmatprep.subr.mxu0 0.0
        %1403 = vmatpush2.msra.mxu0 0.0
        %1404 = vmatprep.subr.mxu0 0.0
        %1405 = vmatpush2.msra.mxu0 0.0
        %1406 = vmatprep.subr.mxu0 0.0
        %1407 = vmatpush2.msra.mxu0 0.0
        %1408 = vmatprep.subr.mxu0 0.0
        %1409 = vmatpush2.msra.mxu0 0.0
        %1410 = vmatprep.subr.mxu0 0.0
        %1411 = vmatpush2.msra.mxu0 0.0
        %1412 = vmatprep.subr.mxu0 0.0
        %1413 = vmatpush2.msra.mxu0 0.0
        %1414 = vmatprep.subr.mxu0 0.0
        %1415 = vmatpush2.msra.mxu0 0.0
        %1416 = vmatprep.subr.mxu0 0.0
        %1417 = vmatpush2.msra.mxu0 0.0
        %1418 = vmatprep.subr.mxu0 0.0
        %1419 = vmatpush2.msra.mxu0 0.0
        %1420 = vmatprep.subr.mxu0 0.0
        %1421 = vmatpush2.msra.mxu0 0.0
        %1422 = vmatprep.subr.mxu0 0.0
        %1423 = vmatpush2.msra.mxu0 0.0
        %1424 = vmatprep.subr.mxu0 0.0
        %1425 = vmatpush2.msra.mxu0 0.0
        %1426 = vmatprep.subr.mxu0 0.0
        %1427 = vmatpush2.msra.mxu0 0.0
        %1428 = vmatprep.subr.mxu0 0.0
        %1429 = vmatpush2.msra.mxu0 0.0
        %1430 = vmatprep.subr.mxu0 0.0
        %1431 = vmatpush2.msra.mxu0 0.0
        %1432 = vmatprep.subr.mxu0 0.0
        %1433 = vmatpush2.msra.mxu0 0.0
        %1434 = vmatprep.mubr.f32.mxu0 0.0
        %1435 = vmatmul.mubr.f32.gmra.mxu0 %v1330
        %v1436 = vpop.f32.mrf.mxu0
        %v1437 = vadd.f32 0.0, %v1436
        %v1438 = vpop.f32.mrf.mxu0
        %v1439 = vadd.f32 0.0, %v1438
        %1440 = vmatprep.mubr.f32.mxu0 0.0
        %1441 = vmatmul.mubr.f32.gmra.mxu0 %v1331
        %v1442 = vpop.f32.mrf.mxu0
        %v1443 = vadd.f32 0.0, %v1442
        %v1444 = vpop.f32.mrf.mxu0
        %v1445 = vadd.f32 0.0, %v1444
        %1446 = vmatprep.mubr.f32.mxu0 0.0
        %1447 = vmatmul.mubr.f32.gmra.mxu0 %v1332
        %v1448 = vpop.f32.mrf.mxu0
        %v1449 = vadd.f32 0.0, %v1448
        %v1450 = vpop.f32.mrf.mxu0
        %v1451 = vadd.f32 0.0, %v1450
        %1452 = vmatprep.mubr.f32.mxu0 0.0
        %1453 = vmatmul.mubr.f32.gmra.mxu0 %v1333
        %v1454 = vpop.f32.mrf.mxu0
        %v1455 = vadd.f32 0.0, %v1454
        %v1456 = vpop.f32.mrf.mxu0
        %v1457 = vadd.f32 0.0, %v1456
        %1458 = vmatprep.mubr.f32.mxu0 0.0
        %1459 = vmatmul.mubr.f32.gmra.mxu0 %v1334
        %v1460 = vpop.f32.mrf.mxu0
        %v1461 = vadd.f32 0.0, %v1460
        %v1462 = vpop.f32.mrf.mxu0
        %v1463 = vadd.f32 0.0, %v1462
        %1464 = vmatprep.mubr.f32.mxu0 0.0
        %1465 = vmatmul.mubr.f32.gmra.mxu0 %v1335
        %v1466 = vpop.f32.mrf.mxu0
        %v1467 = vadd.f32 0.0, %v1466
        %v1468 = vpop.f32.mrf.mxu0
        %v1469 = vadd.f32 0.0, %v1468
        %1470 = vmatprep.mubr.f32.mxu0 0.0
        %1471 = vmatmul.mubr.f32.gmra.mxu0 %v1336
        %v1472 = vpop.f32.mrf.mxu0
        %v1473 = vadd.f32 0.0, %v1472
        %v1474 = vpop.f32.mrf.mxu0
        %v1475 = vadd.f32 0.0, %v1474
        %1476 = vmatprep.mubr.f32.mxu0 0.0
        %1477 = vmatmul.mubr.f32.gmra.mxu0 %v1337
        %v1478 = vpop.f32.mrf.mxu0
        %v1479 = vadd.f32 0.0, %v1478
        %v1480 = vpop.f32.mrf.mxu0
        %v1481 = vadd.f32 0.0, %v1480
        %1482 = vdwg.mxu0
        %v1483 = vsub.f32 0.0, %v1437
        %v1484 = vsub.f32 0.0, %v1443
        %v1485 = vsub.f32 0.0, %v1449
        %v1486 = vsub.f32 0.0, %v1455
        %v1487 = vsub.f32 0.0, %v1461
        %v1488 = vsub.f32 0.0, %v1467
        %v1489 = vsub.f32 0.0, %v1473
        %v1490 = vsub.f32 0.0, %v1479
        %v1491 = vmul.f32 %v1483, 1.442695
        %v1492 = vpow.pop %v1491
        %v1493 = vmul.f32 %v1484, 1.442695
        %v1494 = vpow.pop %v1493
        %v1495 = vmul.f32 %v1485, 1.442695
        %v1496 = vpow.pop %v1495
        %v1497 = vmul.f32 %v1486, 1.442695
        %v1498 = vpow.pop %v1497
        %v1499 = vmul.f32 %v1487, 1.442695
        %v1500 = vpow.pop %v1499
        %v1501 = vmul.f32 %v1488, 1.442695
        %v1502 = vpow.pop %v1501
        %v1503 = vmul.f32 %v1489, 1.442695
        %v1504 = vpow.pop %v1503
        %v1505 = vmul.f32 %v1490, 1.442695
        %v1506 = vpow.pop %v1505
        %v1507 = vadd.f32 %v1492, 1.0
        %v1508 = vadd.f32 %v1494, 1.0
        %v1509 = vadd.f32 %v1496, 1.0
        %v1510 = vadd.f32 %v1498, 1.0
        %v1511 = vadd.f32 %v1500, 1.0
        %v1512 = vadd.f32 %v1502, 1.0
        %v1513 = vadd.f32 %v1504, 1.0
        %v1514 = vadd.f32 %v1506, 1.0
        %v1515 = vrcp.pop %v1507
        %v1516 = vrcp.pop %v1508
        %v1517 = vrcp.pop %v1509
        %v1518 = vrcp.pop %v1510
        %v1519 = vrcp.pop %v1511
        %v1520 = vrcp.pop %v1512
        %v1521 = vrcp.pop %v1513
        %v1522 = vrcp.pop %v1514
        %v1523 = vmul.f32 %v1437, %v1515
        %v1524 = vmul.f32 %v1443, %v1516
        %v1525 = vmul.f32 %v1449, %v1517
        %v1526 = vmul.f32 %v1455, %v1518
        %v1527 = vmul.f32 %v1461, %v1519
        %v1528 = vmul.f32 %v1467, %v1520
        %v1529 = vmul.f32 %v1473, %v1521
        %v1530 = vmul.f32 %v1479, %v1522
        %v1531 = vsub.f32 0.0, %v1439
        %v1532 = vsub.f32 0.0, %v1445
        %v1533 = vsub.f32 0.0, %v1451
        %v1534 = vsub.f32 0.0, %v1457
        %v1535 = vsub.f32 0.0, %v1463
        %v1536 = vsub.f32 0.0, %v1469
        %v1537 = vsub.f32 0.0, %v1475
        %v1538 = vsub.f32 0.0, %v1481
        %v1539 = vmul.f32 %v1531, 1.442695
        %v1540 = vpow.pop %v1539
        %v1541 = vmul.f32 %v1532, 1.442695
        %v1542 = vpow.pop %v1541
        %v1543 = vmul.f32 %v1533, 1.442695
        %v1544 = vpow.pop %v1543
        %v1545 = vmul.f32 %v1534, 1.442695
        %v1546 = vpow.pop %v1545
        %v1547 = vmul.f32 %v1535, 1.442695
        %v1548 = vpow.pop %v1547
        %v1549 = vmul.f32 %v1536, 1.442695
        %v1550 = vpow.pop %v1549
        %v1551 = vmul.f32 %v1537, 1.442695
        %v1552 = vpow.pop %v1551
        %v1553 = vmul.f32 %v1538, 1.442695
        %v1554 = vpow.pop %v1553
        %v1555 = vadd.f32 %v1540, 1.0
        %v1556 = vadd.f32 %v1542, 1.0
        %v1557 = vadd.f32 %v1544, 1.0
        %v1558 = vadd.f32 %v1546, 1.0
        %v1559 = vadd.f32 %v1548, 1.0
        %v1560 = vadd.f32 %v1550, 1.0
        %v1561 = vadd.f32 %v1552, 1.0
        %v1562 = vadd.f32 %v1554, 1.0
        %v1563 = vrcp.pop %v1555
        %v1564 = vrcp.pop %v1556
        %v1565 = vrcp.pop %v1557
        %v1566 = vrcp.pop %v1558
        %v1567 = vrcp.pop %v1559
        %v1568 = vrcp.pop %v1560
        %v1569 = vrcp.pop %v1561
        %v1570 = vrcp.pop %v1562
        %v1571 = vld [vmem:[%s11] sm:$0xff]
        %v1572 = vld [vmem:[%s11 + $0x8] sm:$0xff]
        %v1573 = vld [vmem:[%s11 + $0x10] sm:$0xff]
        %v1574 = vld [vmem:[%s11 + $0x18] sm:$0xff]
        %v1575 = vld [vmem:[%s11 + $0x20] sm:$0xff]
        %v1576 = vld [vmem:[%s11 + $0x28] sm:$0xff]
        %v1577 = vld [vmem:[%s11 + $0x30] sm:$0xff]
        %v1578 = vld [vmem:[%s11 + $0x38] sm:$0xff]
        %v1579 = vld [vmem:[%s11 + $0x40] sm:$0xff]
        %v1580 = vld [vmem:[%s11 + $0x48] sm:$0xff]
        %v1581 = vld [vmem:[%s11 + $0x50] sm:$0xff]
        %v1582 = vld [vmem:[%s11 + $0x58] sm:$0xff]
        %v1583 = vld [vmem:[%s11 + $0x60] sm:$0xff]
        %v1584 = vld [vmem:[%s11 + $0x68] sm:$0xff]
        %v1585 = vld [vmem:[%s11 + $0x70] sm:$0xff]
        %v1586 = vld [vmem:[%s11 + $0x78] sm:$0xff]
        %1587 = vmatprep.subr.mxu0 0.0
        %1588 = vmatpush1.msra.mxu0 %v1586
        %1589 = vmatprep.subr.mxu0 0.0
        %1590 = vmatpush1.msra.mxu0 %v1585
        %1591 = vmatprep.subr.mxu0 0.0
        %1592 = vmatpush1.msra.mxu0 %v1584
        %1593 = vmatprep.subr.mxu0 0.0
        %1594 = vmatpush1.msra.mxu0 %v1583
        %1595 = vmatprep.subr.mxu0 0.0
        %1596 = vmatpush1.msra.mxu0 %v1582
        %1597 = vmatprep.subr.mxu0 0.0
        %1598 = vmatpush1.msra.mxu0 %v1581
        %1599 = vmatprep.subr.mxu0 0.0
        %1600 = vmatpush1.msra.mxu0 %v1580
        %1601 = vmatprep.subr.mxu0 0.0
        %1602 = vmatpush1.msra.mxu0 %v1579
        %1603 = vmatprep.subr.mxu0 0.0
        %1604 = vmatpush1.msra.mxu0 %v1578
        %1605 = vmatprep.subr.mxu0 0.0
        %1606 = vmatpush1.msra.mxu0 %v1577
        %1607 = vmatprep.subr.mxu0 0.0
        %1608 = vmatpush1.msra.mxu0 %v1576
        %1609 = vmatprep.subr.mxu0 0.0
        %1610 = vmatpush1.msra.mxu0 %v1575
        %1611 = vmatprep.subr.mxu0 0.0
        %1612 = vmatpush1.msra.mxu0 %v1574
        %1613 = vmatprep.subr.mxu0 0.0
        %1614 = vmatpush1.msra.mxu0 %v1573
        %1615 = vmatprep.subr.mxu0 0.0
        %1616 = vmatpush1.msra.mxu0 %v1572
        %1617 = vmatprep.subr.mxu0 0.0
        %1618 = vmatpush1.msra.mxu0 %v1571
        %1619 = vmatprep.subr.mxu0 0.0
        %1620 = vmatpush2.msra.mxu0 0.0
        %1621 = vmatprep.subr.mxu0 0.0
        %1622 = vmatpush2.msra.mxu0 0.0
        %1623 = vmatprep.subr.mxu0 0.0
        %1624 = vmatpush2.msra.mxu0 0.0
        %1625 = vmatprep.subr.mxu0 0.0
        %1626 = vmatpush2.msra.mxu0 0.0
        %1627 = vmatprep.subr.mxu0 0.0
        %1628 = vmatpush2.msra.mxu0 0.0
        %1629 = vmatprep.subr.mxu0 0.0
        %1630 = vmatpush2.msra.mxu0 0.0
        %1631 = vmatprep.subr.mxu0 0.0
        %1632 = vmatpush2.msra.mxu0 0.0
        %1633 = vmatprep.subr.mxu0 0.0
        %1634 = vmatpush2.msra.mxu0 0.0
        %1635 = vmatprep.subr.mxu0 0.0
        %1636 = vmatpush2.msra.mxu0 0.0
        %1637 = vmatprep.subr.mxu0 0.0
        %1638 = vmatpush2.msra.mxu0 0.0
        %1639 = vmatprep.subr.mxu0 0.0
        %1640 = vmatpush2.msra.mxu0 0.0
        %1641 = vmatprep.subr.mxu0 0.0
        %1642 = vmatpush2.msra.mxu0 0.0
        %1643 = vmatprep.subr.mxu0 0.0
        %1644 = vmatpush2.msra.mxu0 0.0
        %1645 = vmatprep.subr.mxu0 0.0
        %1646 = vmatpush2.msra.mxu0 0.0
        %1647 = vmatprep.subr.mxu0 0.0
        %1648 = vmatpush2.msra.mxu0 0.0
        %1649 = vmatprep.subr.mxu0 0.0
        %1650 = vmatpush2.msra.mxu0 0.0
        %1651 = vmatprep.mubr.f32.mxu0 0.0
        %1652 = vmatmul.mubr.f32.gmra.mxu0 %v1523
        %v1653 = vpop.f32.mrf.mxu0
        %v1654 = vadd.f32 0.0, %v1653
        %v1655 = vpop.f32.mrf.mxu0
        %1656 = vmatprep.mubr.f32.mxu0 0.0
        %1657 = vmatmul.mubr.f32.gmra.mxu0 %v1524
        %v1658 = vpop.f32.mrf.mxu0
        %v1659 = vadd.f32 0.0, %v1658
        %v1660 = vpop.f32.mrf.mxu0
        %1661 = vmatprep.mubr.f32.mxu0 0.0
        %1662 = vmatmul.mubr.f32.gmra.mxu0 %v1525
        %v1663 = vpop.f32.mrf.mxu0
        %v1664 = vadd.f32 0.0, %v1663
        %v1665 = vpop.f32.mrf.mxu0
        %1666 = vmatprep.mubr.f32.mxu0 0.0
        %1667 = vmatmul.mubr.f32.gmra.mxu0 %v1526
        %v1668 = vpop.f32.mrf.mxu0
        %v1669 = vadd.f32 0.0, %v1668
        %v1670 = vpop.f32.mrf.mxu0
        %1671 = vmatprep.mubr.f32.mxu0 0.0
        %1672 = vmatmul.mubr.f32.gmra.mxu0 %v1527
        %v1673 = vpop.f32.mrf.mxu0
        %v1674 = vadd.f32 0.0, %v1673
        %v1675 = vpop.f32.mrf.mxu0
        %1676 = vmatprep.mubr.f32.mxu0 0.0
        %1677 = vmatmul.mubr.f32.gmra.mxu0 %v1528
        %v1678 = vpop.f32.mrf.mxu0
        %v1679 = vadd.f32 0.0, %v1678
        %v1680 = vpop.f32.mrf.mxu0
        %1681 = vmatprep.mubr.f32.mxu0 0.0
        %1682 = vmatmul.mubr.f32.gmra.mxu0 %v1529
        %v1683 = vpop.f32.mrf.mxu0
        %v1684 = vadd.f32 0.0, %v1683
        %v1685 = vpop.f32.mrf.mxu0
        %1686 = vmatprep.mubr.f32.mxu0 0.0
        %1687 = vmatmul.mubr.f32.gmra.mxu0 %v1530
        %v1688 = vpop.f32.mrf.mxu0
        %v1689 = vadd.f32 0.0, %v1688
        %v1690 = vpop.f32.mrf.mxu0
        %1691 = vdwg.mxu0
        %1693 = vset.pattern.permute.xlu0 0
        %1694 = vperm.xlu0 %1693, %v660
        %v1695 = vpop.permute.xlu0 %1694
        %v1698 = vlaneseq
        %v1699 = vshrl.u32 %v1698, 7
        %v1700 = vsub.s32 0, %v1699
        %v1701 = vrot.slane %v661, %v1700
        %v1703 = vmul.f32 %v1695, %v1701
        %v1704 = vlaneseq
        %v1705 = vshrl.u32 %v1704, 7
        %vm1706 = vcmp.ne.s32.totalorder %v1705, %v739
        %v1707 = vsel %vm1706, 1, 0
        %v1708 = vcvt.s32.f32 %v1707
        %v1709 = vmax.f32 %v761, 1e-20
        %v1710 = vrsqrt.pop %v1709
        %v1712 = vlaneseq
        %v1713 = vshrl.u32 %v1712, 7
        %v1714 = vsub.s32 0, %v1713
        %v1715 = vrot.slane %v1703, %v1714
        %1717 = vbcast.lane.b32.xlu0 %v1715, 256
        %v1718 = vpop.permute.xlu0 %1717
        %v1719 = vlaneseq
        %v1720 = vshrl.u32 %v1719, 7
        %v1721 = vsub.s32 1, %v1720
        %v1722 = vrot.slane %v1703, %v1721
        %1724 = vbcast.lane.b32.xlu0 %v1722, 256
        %v1725 = vpop.permute.xlu0 %1724
        %v1726 = vlaneseq
        %v1727 = vshrl.u32 %v1726, 7
        %v1728 = vsub.s32 2, %v1727
        %v1729 = vrot.slane %v1703, %v1728
        %1731 = vbcast.lane.b32.xlu0 %v1729, 256
        %v1732 = vpop.permute.xlu0 %1731
        %v1733 = vlaneseq
        %v1734 = vshrl.u32 %v1733, 7
        %v1735 = vsub.s32 3, %v1734
        %v1736 = vrot.slane %v1703, %v1735
        %1738 = vbcast.lane.b32.xlu0 %v1736, 256
        %v1739 = vpop.permute.xlu0 %1738
        %v1740 = vlaneseq
        %v1741 = vshrl.u32 %v1740, 7
        %v1742 = vsub.s32 4, %v1741
        %v1743 = vrot.slane %v1703, %v1742
        %1745 = vbcast.lane.b32.xlu0 %v1743, 256
        %v1746 = vpop.permute.xlu0 %1745
        %v1747 = vlaneseq
        %v1748 = vshrl.u32 %v1747, 7
        %v1749 = vsub.s32 5, %v1748
        %v1750 = vrot.slane %v1703, %v1749
        %1752 = vbcast.lane.b32.xlu0 %v1750, 256
        %v1753 = vpop.permute.xlu0 %1752
        %v1754 = vlaneseq
        %v1755 = vshrl.u32 %v1754, 7
        %v1756 = vsub.s32 6, %v1755
        %v1757 = vrot.slane %v1703, %v1756
        %1759 = vbcast.lane.b32.xlu0 %v1757, 256
        %v1760 = vpop.permute.xlu0 %1759
        %v1761 = vlaneseq
        %v1762 = vshrl.u32 %v1761, 7
        %v1763 = vsub.s32 7, %v1762
        %v1764 = vrot.slane %v1703, %v1763
        %1766 = vbcast.lane.b32.xlu0 %v1764, 256
        %v1767 = vpop.permute.xlu0 %1766
        %v1776 = vmul.f32 %v1654, %v1718
        %v1777 = vmul.f32 %v1659, %v1725
        %v1778 = vmul.f32 %v1664, %v1732
        %v1779 = vmul.f32 %v1669, %v1739
        %v1780 = vmul.f32 %v1674, %v1746
        %v1781 = vmul.f32 %v1679, %v1753
        %v1782 = vmul.f32 %v1684, %v1760
        %v1783 = vmul.f32 %v1689, %v1767
        %v1785 = vlaneseq
        %v1786 = vshrl.u32 %v1785, 7
        %v1787 = vsub.s32 0, %v1786
        %v1788 = vrot.slane %v1710, %v1787
        %1790 = vbcast.lane.b32.xlu0 %v1788, 256
        %v1791 = vpop.permute.xlu0 %1790
        %v1792 = vlaneseq
        %v1793 = vshrl.u32 %v1792, 7
        %v1794 = vsub.s32 1, %v1793
        %v1795 = vrot.slane %v1710, %v1794
        %1797 = vbcast.lane.b32.xlu0 %v1795, 256
        %v1798 = vpop.permute.xlu0 %1797
        %v1799 = vlaneseq
        %v1800 = vshrl.u32 %v1799, 7
        %v1801 = vsub.s32 2, %v1800
        %v1802 = vrot.slane %v1710, %v1801
        %1804 = vbcast.lane.b32.xlu0 %v1802, 256
        %v1805 = vpop.permute.xlu0 %1804
        %v1806 = vlaneseq
        %v1807 = vshrl.u32 %v1806, 7
        %v1808 = vsub.s32 3, %v1807
        %v1809 = vrot.slane %v1710, %v1808
        %1811 = vbcast.lane.b32.xlu0 %v1809, 256
        %v1812 = vpop.permute.xlu0 %1811
        %v1813 = vlaneseq
        %v1814 = vshrl.u32 %v1813, 7
        %v1815 = vsub.s32 4, %v1814
        %v1816 = vrot.slane %v1710, %v1815
        %1818 = vbcast.lane.b32.xlu0 %v1816, 256
        %v1819 = vpop.permute.xlu0 %1818
        %v1820 = vlaneseq
        %v1821 = vshrl.u32 %v1820, 7
        %v1822 = vsub.s32 5, %v1821
        %v1823 = vrot.slane %v1710, %v1822
        %1825 = vbcast.lane.b32.xlu0 %v1823, 256
        %v1826 = vpop.permute.xlu0 %1825
        %v1827 = vlaneseq
        %v1828 = vshrl.u32 %v1827, 7
        %v1829 = vsub.s32 6, %v1828
        %v1830 = vrot.slane %v1710, %v1829
        %1832 = vbcast.lane.b32.xlu0 %v1830, 256
        %v1833 = vpop.permute.xlu0 %1832
        %v1834 = vlaneseq
        %v1835 = vshrl.u32 %v1834, 7
        %v1836 = vsub.s32 7, %v1835
        %v1837 = vrot.slane %v1710, %v1836
        %1839 = vbcast.lane.b32.xlu0 %v1837, 256
        %v1840 = vpop.permute.xlu0 %1839
        %v1849 = vmul.f32 %v1776, %v1791
        %v1850 = vmul.f32 %v1777, %v1798
        %v1851 = vmul.f32 %v1778, %v1805
        %v1852 = vmul.f32 %v1779, %v1812
        %v1853 = vmul.f32 %v1780, %v1819
        %v1854 = vmul.f32 %v1781, %v1826
        %v1855 = vmul.f32 %v1782, %v1833
        %v1856 = vmul.f32 %v1783, %v1840
        %v1858 = vlaneseq
        %v1859 = vshrl.u32 %v1858, 7
        %v1860 = vsub.s32 0, %v1859
        %v1861 = vrot.slane %v1708, %v1860
        %1863 = vbcast.lane.b32.xlu0 %v1861, 256
        %v1864 = vpop.permute.xlu0 %1863
        %v1865 = vlaneseq
        %v1866 = vshrl.u32 %v1865, 7
        %v1867 = vsub.s32 1, %v1866
        %v1868 = vrot.slane %v1708, %v1867
        %1870 = vbcast.lane.b32.xlu0 %v1868, 256
        %v1871 = vpop.permute.xlu0 %1870
        %v1872 = vlaneseq
        %v1873 = vshrl.u32 %v1872, 7
        %v1874 = vsub.s32 2, %v1873
        %v1875 = vrot.slane %v1708, %v1874
        %1877 = vbcast.lane.b32.xlu0 %v1875, 256
        %v1878 = vpop.permute.xlu0 %1877
        %v1879 = vlaneseq
        %v1880 = vshrl.u32 %v1879, 7
        %v1881 = vsub.s32 3, %v1880
        %v1882 = vrot.slane %v1708, %v1881
        %1884 = vbcast.lane.b32.xlu0 %v1882, 256
        %v1885 = vpop.permute.xlu0 %1884
        %v1886 = vlaneseq
        %v1887 = vshrl.u32 %v1886, 7
        %v1888 = vsub.s32 4, %v1887
        %v1889 = vrot.slane %v1708, %v1888
        %1891 = vbcast.lane.b32.xlu0 %v1889, 256
        %v1892 = vpop.permute.xlu0 %1891
        %v1893 = vlaneseq
        %v1894 = vshrl.u32 %v1893, 7
        %v1895 = vsub.s32 5, %v1894
        %v1896 = vrot.slane %v1708, %v1895
        %1898 = vbcast.lane.b32.xlu0 %v1896, 256
        %v1899 = vpop.permute.xlu0 %1898
        %v1900 = vlaneseq
        %v1901 = vshrl.u32 %v1900, 7
        %v1902 = vsub.s32 6, %v1901
        %v1903 = vrot.slane %v1708, %v1902
        %1905 = vbcast.lane.b32.xlu0 %v1903, 256
        %v1906 = vpop.permute.xlu0 %1905
        %v1907 = vlaneseq
        %v1908 = vshrl.u32 %v1907, 7
        %v1909 = vsub.s32 7, %v1908
        %v1910 = vrot.slane %v1708, %v1909
        %1912 = vbcast.lane.b32.xlu0 %v1910, 256
        %v1913 = vpop.permute.xlu0 %1912
        %v1922 = vmul.f32 %v1849, %v1864
        %v1923 = vmul.f32 %v1850, %v1871
        %v1924 = vmul.f32 %v1851, %v1878
        %v1925 = vmul.f32 %v1852, %v1885
        %v1926 = vmul.f32 %v1853, %v1892
        %v1927 = vmul.f32 %v1854, %v1899
        %v1928 = vmul.f32 %v1855, %v1906
        %v1929 = vmul.f32 %v1856, %v1913
        %1938 = vset.pattern.permute.xlu0 0
        %1939 = vperm.xlu0 %1938, %v1922
        %v1940 = vpop.permute.xlu0 %1939
        %1941 = vset.pattern.permute.xlu0 0
        %1942 = vperm.xlu0 %1941, %v1923
        %v1943 = vpop.permute.xlu0 %1942
        %1944 = vset.pattern.permute.xlu0 0
        %1945 = vperm.xlu0 %1944, %v1924
        %v1946 = vpop.permute.xlu0 %1945
        %1947 = vset.pattern.permute.xlu0 0
        %1948 = vperm.xlu0 %1947, %v1925
        %v1949 = vpop.permute.xlu0 %1948
        %1950 = vset.pattern.permute.xlu0 0
        %1951 = vperm.xlu0 %1950, %v1926
        %v1952 = vpop.permute.xlu0 %1951
        %1953 = vset.pattern.permute.xlu0 0
        %1954 = vperm.xlu0 %1953, %v1927
        %v1955 = vpop.permute.xlu0 %1954
        %1956 = vset.pattern.permute.xlu0 0
        %1957 = vperm.xlu0 %1956, %v1928
        %v1958 = vpop.permute.xlu0 %1957
        %1959 = vset.pattern.permute.xlu0 0
        %1960 = vperm.xlu0 %1959, %v1929
        %v1961 = vpop.permute.xlu0 %1960
        %v1962 = vlaneseq
        %v1963 = vshrl.u32 %v1962, 7
        %v1964 = vsub.s32 %v739, %v1963
        %v1965 = vrot.slane %v1940, %v1964
        %v1966 = vlaneseq
        %v1967 = vshrl.u32 %v1966, 7
        %v1968 = vsub.s32 %v739, %v1967
        %v1969 = vrot.slane %v1943, %v1968
        %v1970 = vlaneseq
        %v1971 = vshrl.u32 %v1970, 7
        %v1972 = vsub.s32 %v739, %v1971
        %v1973 = vrot.slane %v1946, %v1972
        %v1974 = vlaneseq
        %v1975 = vshrl.u32 %v1974, 7
        %v1976 = vsub.s32 %v739, %v1975
        %v1977 = vrot.slane %v1949, %v1976
        %v1978 = vlaneseq
        %v1979 = vshrl.u32 %v1978, 7
        %v1980 = vsub.s32 %v739, %v1979
        %v1981 = vrot.slane %v1952, %v1980
        %v1982 = vlaneseq
        %v1983 = vshrl.u32 %v1982, 7
        %v1984 = vsub.s32 %v739, %v1983
        %v1985 = vrot.slane %v1955, %v1984
        %v1986 = vlaneseq
        %v1987 = vshrl.u32 %v1986, 7
        %v1988 = vsub.s32 %v739, %v1987
        %v1989 = vrot.slane %v1958, %v1988
        %v1990 = vlaneseq
        %v1991 = vshrl.u32 %v1990, 7
        %v1992 = vsub.s32 %v739, %v1991
        %v1993 = vrot.slane %v1961, %v1992
        %v1994 = vsel %vm744, %v1969, %v1965
        %v1995 = vsel %vm745, %v1973, %v1994
        %v1996 = vsel %vm747, %v1977, %v1995
        %v1997 = vsel %vm749, %v1981, %v1996
        %v1998 = vsel %vm751, %v1985, %v1997
        %v1999 = vsel %vm753, %v1989, %v1998
        %v2000 = vsel %vm755, %v1993, %v1999
        %vm2001 = vcmask 64512
        %v2002 = vsel %vm2001, %v2000, 0
        %2004 = vmatprep.subr.mxu0 0.0
        %2005 = vmatpush1.msra.mxu0 0.0
        %2006 = vmatprep.subr.mxu0 0.0
        %2007 = vmatpush1.msra.mxu0 0.0
        %2008 = vmatprep.subr.mxu0 0.0
        %2009 = vmatpush1.msra.mxu0 0.0
        %2010 = vmatprep.subr.mxu0 0.0
        %2011 = vmatpush1.msra.mxu0 0.0
        %2012 = vmatprep.subr.mxu0 0.0
        %2013 = vmatpush1.msra.mxu0 0.0
        %2014 = vmatprep.subr.mxu0 0.0
        %2015 = vmatpush1.msra.mxu0 0.0
        %2016 = vmatprep.subr.mxu0 0.0
        %2017 = vmatpush1.msra.mxu0 0.0
        %2018 = vmatprep.subr.mxu0 0.0
        %2019 = vmatpush1.msra.mxu0 0.0
        %2020 = vmatprep.subr.mxu0 0.0
        %2021 = vmatpush1.msra.mxu0 0.0
        %2022 = vmatprep.subr.mxu0 0.0
        %2023 = vmatpush1.msra.mxu0 0.0
        %2024 = vmatprep.subr.mxu0 0.0
        %2025 = vmatpush1.msra.mxu0 0.0
        %2026 = vmatprep.subr.mxu0 0.0
        %2027 = vmatpush1.msra.mxu0 0.0
        %2028 = vmatprep.subr.mxu0 0.0
        %2029 = vmatpush1.msra.mxu0 0.0
        %2030 = vmatprep.subr.mxu0 0.0
        %2031 = vmatpush1.msra.mxu0 0.0
        %2032 = vmatprep.subr.mxu0 0.0
        %2033 = vmatpush1.msra.mxu0 0.0
        %2034 = vmatprep.subr.mxu0 0.0
        %2035 = vmatpush1.msra.mxu0 %v659
        %2036 = vmatprep.subr.mxu0 0.0
        %2037 = vmatpush2.msra.mxu0 0.0
        %2038 = vmatprep.subr.mxu0 0.0
        %2039 = vmatpush2.msra.mxu0 0.0
        %2040 = vmatprep.subr.mxu0 0.0
        %2041 = vmatpush2.msra.mxu0 0.0
        %2042 = vmatprep.subr.mxu0 0.0
        %2043 = vmatpush2.msra.mxu0 0.0
        %2044 = vmatprep.subr.mxu0 0.0
        %2045 = vmatpush2.msra.mxu0 0.0
        %2046 = vmatprep.subr.mxu0 0.0
        %2047 = vmatpush2.msra.mxu0 0.0
        %2048 = vmatprep.subr.mxu0 0.0
        %2049 = vmatpush2.msra.mxu0 0.0
        %2050 = vmatprep.subr.mxu0 0.0
        %2051 = vmatpush2.msra.mxu0 0.0
        %2052 = vmatprep.subr.mxu0 0.0
        %2053 = vmatpush2.msra.mxu0 0.0
        %2054 = vmatprep.subr.mxu0 0.0
        %2055 = vmatpush2.msra.mxu0 0.0
        %2056 = vmatprep.subr.mxu0 0.0
        %2057 = vmatpush2.msra.mxu0 0.0
        %2058 = vmatprep.subr.mxu0 0.0
        %2059 = vmatpush2.msra.mxu0 0.0
        %2060 = vmatprep.subr.mxu0 0.0
        %2061 = vmatpush2.msra.mxu0 0.0
        %2062 = vmatprep.subr.mxu0 0.0
        %2063 = vmatpush2.msra.mxu0 0.0
        %2064 = vmatprep.subr.mxu0 0.0
        %2065 = vmatpush2.msra.mxu0 0.0
        %2066 = vmatprep.subr.mxu0 0.0
        %2067 = vmatpush2.msra.mxu0 0.0
        %2068 = vmatprep.mubr.f32.mxu0 0.0
        %2069 = vmatmul.mubr.f32.gmra.mxu0 %v2002
        %v2070 = vpop.f32.mrf.mxu0
        %v2071 = vadd.f32 0.0, %v2070
        %v2072 = vpop.f32.mrf.mxu0
        %2073 = vdwg.mxu0
        %v2075 = vsel %vm2001, %v2000, 0.0
        %2076 = vadd.xlane.f32.xlu0 %v2075
        %v2077 = vpop.xlane.xlu0 %2076
        %v2078 = vmul.f32 %v2077, %v659
        %v2079 = vsub.f32 %v2078, %v2071
        %v2081 = vlaneseq
        %v2082 = vshrl.u32 %v2081, 7
        %v2083 = vsub.s32 0, %v2082
        %v2084 = vrot.slane %v663, %v2083
        %2085 = vset.pattern.permute.xlu0 0
        %2086 = vperm.xlu0 %2085, %v2084
        %v2087 = vpop.permute.xlu0 %2086
        %v2089 = vmul.f32 %v2087, %v2079
        %v2090 = vadd.f32 %v659, %v2089
        %2092 = vset.pattern.permute.xlu0 0
        %2093 = vperm.xlu0 %2092, %v1563
        %v2094 = vpop.permute.xlu0 %2093
        %2097 = vset.pattern.permute.xlu0 0
        %2098 = vperm.xlu0 %2097, %v1564
        %v2099 = vpop.permute.xlu0 %2098
        %2102 = vset.pattern.permute.xlu0 0
        %2103 = vperm.xlu0 %2102, %v1565
        %v2104 = vpop.permute.xlu0 %2103
        %2107 = vset.pattern.permute.xlu0 0
        %2108 = vperm.xlu0 %2107, %v1566
        %v2109 = vpop.permute.xlu0 %2108
        %2112 = vset.pattern.permute.xlu0 0
        %2113 = vperm.xlu0 %2112, %v1567
        %v2114 = vpop.permute.xlu0 %2113
        %2117 = vset.pattern.permute.xlu0 0
        %2118 = vperm.xlu0 %2117, %v1568
        %v2119 = vpop.permute.xlu0 %2118
        %2122 = vset.pattern.permute.xlu0 0
        %2123 = vperm.xlu0 %2122, %v1569
        %v2124 = vpop.permute.xlu0 %2123
        %2127 = vset.pattern.permute.xlu0 0
        %2128 = vperm.xlu0 %2127, %v1570
        %v2129 = vpop.permute.xlu0 %2128
        %v2131 = vmul.f32 %v1330, %v2094
        %v2132 = vmul.f32 %v1331, %v2099
        %v2133 = vmul.f32 %v1332, %v2104
        %v2134 = vmul.f32 %v1333, %v2109
        %v2135 = vmul.f32 %v1334, %v2114
        %v2136 = vmul.f32 %v1335, %v2119
        %v2137 = vmul.f32 %v1336, %v2124
        %v2138 = vmul.f32 %v1337, %v2129
        %v2139 = vmul.f32 %v2131, %v1048
        %v2140 = vmul.f32 %v2132, %v1055
        %v2141 = vmul.f32 %v2133, %v1062
        %v2142 = vmul.f32 %v2134, %v1069
        %v2143 = vmul.f32 %v2135, %v1076
        %v2144 = vmul.f32 %v2136, %v1083
        %v2145 = vmul.f32 %v2137, %v1090
        %v2146 = vmul.f32 %v2138, %v1097
        %v2147 = vrot.slane %v2139, 4
        %v2148 = vadd.f32 %v2139, %v2147
        %v2149 = vrot.slane %v2148, 2
        %v2150 = vadd.f32 %v2148, %v2149
        %v2151 = vrot.slane %v2150, 1
        %v2152 = vadd.f32 %v2150, %v2151
        %v2153 = vrot.slane %v2140, 4
        %v2154 = vadd.f32 %v2140, %v2153
        %v2155 = vrot.slane %v2154, 2
        %v2156 = vadd.f32 %v2154, %v2155
        %v2157 = vrot.slane %v2156, 1
        %v2158 = vadd.f32 %v2156, %v2157
        %v2159 = vrot.slane %v2141, 4
        %v2160 = vadd.f32 %v2141, %v2159
        %v2161 = vrot.slane %v2160, 2
        %v2162 = vadd.f32 %v2160, %v2161
        %v2163 = vrot.slane %v2162, 1
        %v2164 = vadd.f32 %v2162, %v2163
        %v2165 = vrot.slane %v2142, 4
        %v2166 = vadd.f32 %v2142, %v2165
        %v2167 = vrot.slane %v2166, 2
        %v2168 = vadd.f32 %v2166, %v2167
        %v2169 = vrot.slane %v2168, 1
        %v2170 = vadd.f32 %v2168, %v2169
        %v2171 = vrot.slane %v2143, 4
        %v2172 = vadd.f32 %v2143, %v2171
        %v2173 = vrot.slane %v2172, 2
        %v2174 = vadd.f32 %v2172, %v2173
        %v2175 = vrot.slane %v2174, 1
        %v2176 = vadd.f32 %v2174, %v2175
        %v2177 = vrot.slane %v2144, 4
        %v2178 = vadd.f32 %v2144, %v2177
        %v2179 = vrot.slane %v2178, 2
        %v2180 = vadd.f32 %v2178, %v2179
        %v2181 = vrot.slane %v2180, 1
        %v2182 = vadd.f32 %v2180, %v2181
        %v2183 = vrot.slane %v2145, 4
        %v2184 = vadd.f32 %v2145, %v2183
        %v2185 = vrot.slane %v2184, 2
        %v2186 = vadd.f32 %v2184, %v2185
        %v2187 = vrot.slane %v2186, 1
        %v2188 = vadd.f32 %v2186, %v2187
        %v2189 = vrot.slane %v2146, 4
        %v2190 = vadd.f32 %v2146, %v2189
        %v2191 = vrot.slane %v2190, 2
        %v2192 = vadd.f32 %v2190, %v2191
        %v2193 = vrot.slane %v2192, 1
        %v2194 = vadd.f32 %v2192, %v2193
        %v2203 = vsel %vm744, %v2158, %v2152
        %v2204 = vsel %vm745, %v2164, %v2203
        %v2205 = vsel %vm747, %v2170, %v2204
        %v2206 = vsel %vm749, %v2176, %v2205
        %v2207 = vsel %vm751, %v2182, %v2206
        %v2208 = vsel %vm753, %v2188, %v2207
        %v2209 = vsel %vm755, %v2194, %v2208
        %v2211 = vld [vmem:[#allocation8] sm:$0xff]
        %v2212 = vld [vmem:[#allocation8 + $0x8] sm:$0xff]
        %v2213 = vld [vmem:[#allocation8 + $0x10] sm:$0xff]
        %v2214 = vld [vmem:[#allocation8 + $0x18] sm:$0xff]
        %v2215 = vld [vmem:[#allocation8 + $0x20] sm:$0xff]
        %v2216 = vld [vmem:[#allocation8 + $0x28] sm:$0xff]
        %v2217 = vld [vmem:[#allocation8 + $0x30] sm:$0xff]
        %v2218 = vld [vmem:[#allocation8 + $0x38] sm:$0xff]
        %v2219 = vld [vmem:[#allocation8 + $0x40] sm:$0xff]
        %v2220 = vld [vmem:[#allocation8 + $0x48] sm:$0xff]
        %v2221 = vld [vmem:[#allocation8 + $0x50] sm:$0xff]
        %v2222 = vld [vmem:[#allocation8 + $0x58] sm:$0xff]
        %v2223 = vld [vmem:[#allocation8 + $0x60] sm:$0xff]
        %v2224 = vld [vmem:[#allocation8 + $0x68] sm:$0xff]
        %v2225 = vld [vmem:[#allocation8 + $0x70] sm:$0xff]
        %v2226 = vld [vmem:[#allocation8 + $0x78] sm:$0xff]
        %v2227 = vld [vmem:[#allocation8 + $0x80] sm:$0xff]
        %v2228 = vld [vmem:[#allocation8 + $0x88] sm:$0xff]
        %v2229 = vld [vmem:[#allocation8 + $0x90] sm:$0xff]
        %v2230 = vld [vmem:[#allocation8 + $0x98] sm:$0xff]
        %v2231 = vld [vmem:[#allocation8 + $0xa0] sm:$0xff]
        %v2232 = vld [vmem:[#allocation8 + $0xa8] sm:$0xff]
        %v2233 = vld [vmem:[#allocation8 + $0xb0] sm:$0xff]
        %v2234 = vld [vmem:[#allocation8 + $0xb8] sm:$0xff]
        %v2235 = vld [vmem:[#allocation8 + $0xc0] sm:$0xff]
        %v2236 = vld [vmem:[#allocation8 + $0xc8] sm:$0xff]
        %v2237 = vld [vmem:[#allocation8 + $0xd0] sm:$0xff]
        %v2238 = vld [vmem:[#allocation8 + $0xd8] sm:$0xff]
        %v2239 = vld [vmem:[#allocation8 + $0xe0] sm:$0xff]
        %v2240 = vld [vmem:[#allocation8 + $0xe8] sm:$0xff]
        %v2241 = vld [vmem:[#allocation8 + $0xf0] sm:$0xff]
        %v2242 = vld [vmem:[#allocation8 + $0xf8] sm:$0xff]
        %2243 = vmatprep.subr.mxu0 0.0
        %2244 = vmatpush1.msra.mxu0 %v2226
        %2245 = vmatprep.subr.mxu0 0.0
        %2246 = vmatpush1.msra.mxu0 %v2225
        %2247 = vmatprep.subr.mxu0 0.0
        %2248 = vmatpush1.msra.mxu0 %v2224
        %2249 = vmatprep.subr.mxu0 0.0
        %2250 = vmatpush1.msra.mxu0 %v2223
        %2251 = vmatprep.subr.mxu0 0.0
        %2252 = vmatpush1.msra.mxu0 %v2222
        %2253 = vmatprep.subr.mxu0 0.0
        %2254 = vmatpush1.msra.mxu0 %v2221
        %2255 = vmatprep.subr.mxu0 0.0
        %2256 = vmatpush1.msra.mxu0 %v2220
        %2257 = vmatprep.subr.mxu0 0.0
        %2258 = vmatpush1.msra.mxu0 %v2219
        %2259 = vmatprep.subr.mxu0 0.0
        %2260 = vmatpush1.msra.mxu0 %v2218
        %2261 = vmatprep.subr.mxu0 0.0
        %2262 = vmatpush1.msra.mxu0 %v2217
        %2263 = vmatprep.subr.mxu0 0.0
        %2264 = vmatpush1.msra.mxu0 %v2216
        %2265 = vmatprep.subr.mxu0 0.0
        %2266 = vmatpush1.msra.mxu0 %v2215
        %2267 = vmatprep.subr.mxu0 0.0
        %2268 = vmatpush1.msra.mxu0 %v2214
        %2269 = vmatprep.subr.mxu0 0.0
        %2270 = vmatpush1.msra.mxu0 %v2213
        %2271 = vmatprep.subr.mxu0 0.0
        %2272 = vmatpush1.msra.mxu0 %v2212
        %2273 = vmatprep.subr.mxu0 0.0
        %2274 = vmatpush1.msra.mxu0 %v2211
        %2275 = vmatprep.subr.mxu0 0.0
        %2276 = vmatpush2.msra.mxu0 %v2242
        %2277 = vmatprep.subr.mxu0 0.0
        %2278 = vmatpush2.msra.mxu0 %v2241
        %2279 = vmatprep.subr.mxu0 0.0
        %2280 = vmatpush2.msra.mxu0 %v2240
        %2281 = vmatprep.subr.mxu0 0.0
        %2282 = vmatpush2.msra.mxu0 %v2239
        %2283 = vmatprep.subr.mxu0 0.0
        %2284 = vmatpush2.msra.mxu0 %v2238
        %2285 = vmatprep.subr.mxu0 0.0
        %2286 = vmatpush2.msra.mxu0 %v2237
        %2287 = vmatprep.subr.mxu0 0.0
        %2288 = vmatpush2.msra.mxu0 %v2236
        %2289 = vmatprep.subr.mxu0 0.0
        %2290 = vmatpush2.msra.mxu0 %v2235
        %2291 = vmatprep.subr.mxu0 0.0
        %2292 = vmatpush2.msra.mxu0 %v2234
        %2293 = vmatprep.subr.mxu0 0.0
        %2294 = vmatpush2.msra.mxu0 %v2233
        %2295 = vmatprep.subr.mxu0 0.0
        %2296 = vmatpush2.msra.mxu0 %v2232
        %2297 = vmatprep.subr.mxu0 0.0
        %2298 = vmatpush2.msra.mxu0 %v2231
        %2299 = vmatprep.subr.mxu0 0.0
        %2300 = vmatpush2.msra.mxu0 %v2230
        %2301 = vmatprep.subr.mxu0 0.0
        %2302 = vmatpush2.msra.mxu0 %v2229
        %2303 = vmatprep.subr.mxu0 0.0
        %2304 = vmatpush2.msra.mxu0 %v2228
        %2305 = vmatprep.subr.mxu0 0.0
        %2306 = vmatpush2.msra.mxu0 %v2227
        %2307 = vmatprep.mubr.f32.mxu0 %v2209
        %2308 = vmatmul.mubr.f32.gmra.mxu0 %v658
        %v2309 = vpop.f32.mrf.mxu0
        %v2310 = vadd.f32 0.0, %v2309
        %v2311 = vpop.f32.mrf.mxu0
        %2312 = vdwg.mxu0
        %v2313 = vsub.f32 0.0, %v2310
        %v2314 = vmul.f32 %v2313, 1.442695
        %v2315 = vpow.pop %v2314
        %v2316 = vadd.f32 %v2315, 1.0
        %v2317 = vrcp.pop %v2316
        %v2318 = vmul.f32 %v2310, %v2317
        %v2319 = vld [vmem:[#allocation10] sm:$0xff]
        %v2320 = vld [vmem:[#allocation10 + $0x8] sm:$0xff]
        %v2321 = vld [vmem:[#allocation10 + $0x10] sm:$0xff]
        %v2322 = vld [vmem:[#allocation10 + $0x18] sm:$0xff]
        %v2323 = vld [vmem:[#allocation10 + $0x20] sm:$0xff]
        %v2324 = vld [vmem:[#allocation10 + $0x28] sm:$0xff]
        %v2325 = vld [vmem:[#allocation10 + $0x30] sm:$0xff]
        %v2326 = vld [vmem:[#allocation10 + $0x38] sm:$0xff]
        %v2327 = vld [vmem:[#allocation10 + $0x40] sm:$0xff]
        %v2328 = vld [vmem:[#allocation10 + $0x48] sm:$0xff]
        %v2329 = vld [vmem:[#allocation10 + $0x50] sm:$0xff]
        %v2330 = vld [vmem:[#allocation10 + $0x58] sm:$0xff]
        %v2331 = vld [vmem:[#allocation10 + $0x60] sm:$0xff]
        %v2332 = vld [vmem:[#allocation10 + $0x68] sm:$0xff]
        %v2333 = vld [vmem:[#allocation10 + $0x70] sm:$0xff]
        %v2334 = vld [vmem:[#allocation10 + $0x78] sm:$0xff]
        %2335 = vmatprep.subr.mxu0 0.0
        %2336 = vmatpush1.msra.mxu0 %v2334
        %2337 = vmatprep.subr.mxu0 0.0
        %2338 = vmatpush1.msra.mxu0 %v2333
        %2339 = vmatprep.subr.mxu0 0.0
        %2340 = vmatpush1.msra.mxu0 %v2332
        %2341 = vmatprep.subr.mxu0 0.0
        %2342 = vmatpush1.msra.mxu0 %v2331
        %2343 = vmatprep.subr.mxu0 0.0
        %2344 = vmatpush1.msra.mxu0 %v2330
        %2345 = vmatprep.subr.mxu0 0.0
        %2346 = vmatpush1.msra.mxu0 %v2329
        %2347 = vmatprep.subr.mxu0 0.0
        %2348 = vmatpush1.msra.mxu0 %v2328
        %2349 = vmatprep.subr.mxu0 0.0
        %2350 = vmatpush1.msra.mxu0 %v2327
        %2351 = vmatprep.subr.mxu0 0.0
        %2352 = vmatpush1.msra.mxu0 %v2326
        %2353 = vmatprep.subr.mxu0 0.0
        %2354 = vmatpush1.msra.mxu0 %v2325
        %2355 = vmatprep.subr.mxu0 0.0
        %2356 = vmatpush1.msra.mxu0 %v2324
        %2357 = vmatprep.subr.mxu0 0.0
        %2358 = vmatpush1.msra.mxu0 %v2323
        %2359 = vmatprep.subr.mxu0 0.0
        %2360 = vmatpush1.msra.mxu0 %v2322
        %2361 = vmatprep.subr.mxu0 0.0
        %2362 = vmatpush1.msra.mxu0 %v2321
        %2363 = vmatprep.subr.mxu0 0.0
        %2364 = vmatpush1.msra.mxu0 %v2320
        %2365 = vmatprep.subr.mxu0 0.0
        %2366 = vmatpush1.msra.mxu0 %v2319
        %2367 = vmatprep.subr.mxu0 0.0
        %2368 = vmatpush2.msra.mxu0 0.0
        %2369 = vmatprep.subr.mxu0 0.0
        %2370 = vmatpush2.msra.mxu0 0.0
        %2371 = vmatprep.subr.mxu0 0.0
        %2372 = vmatpush2.msra.mxu0 0.0
        %2373 = vmatprep.subr.mxu0 0.0
        %2374 = vmatpush2.msra.mxu0 0.0
        %2375 = vmatprep.subr.mxu0 0.0
        %2376 = vmatpush2.msra.mxu0 0.0
        %2377 = vmatprep.subr.mxu0 0.0
        %2378 = vmatpush2.msra.mxu0 0.0
        %2379 = vmatprep.subr.mxu0 0.0
        %2380 = vmatpush2.msra.mxu0 0.0
        %2381 = vmatprep.subr.mxu0 0.0
        %2382 = vmatpush2.msra.mxu0 0.0
        %2383 = vmatprep.subr.mxu0 0.0
        %2384 = vmatpush2.msra.mxu0 0.0
        %2385 = vmatprep.subr.mxu0 0.0
        %2386 = vmatpush2.msra.mxu0 0.0
        %2387 = vmatprep.subr.mxu0 0.0
        %2388 = vmatpush2.msra.mxu0 0.0
        %2389 = vmatprep.subr.mxu0 0.0
        %2390 = vmatpush2.msra.mxu0 0.0
        %2391 = vmatprep.subr.mxu0 0.0
        %2392 = vmatpush2.msra.mxu0 0.0
        %2393 = vmatprep.subr.mxu0 0.0
        %2394 = vmatpush2.msra.mxu0 0.0
        %2395 = vmatprep.subr.mxu0 0.0
        %2396 = vmatpush2.msra.mxu0 0.0
        %2397 = vmatprep.subr.mxu0 0.0
        %2398 = vmatpush2.msra.mxu0 0.0
        %2399 = vmatprep.mubr.f32.mxu0 0.0
        %2400 = vmatmul.mubr.f32.gmra.mxu0 %v2318
        %v2401 = vpop.f32.mrf.mxu0
        %v2402 = vadd.f32 0.0, %v2401
        %v2403 = vpop.f32.mrf.mxu0
        %2404 = vdwg.mxu0
        %v2405 = vadd.f32 %v658, %v2402
        %2406 = vst [vmem:[%s632] sm:$0xff] %v2405
        %2407 = vst [vmem:[%s639] sm:$0xff] %v2090
        %s2408 = sand.u32 %s370, 1
        %s2409 = scalar_lea.sflag [#allocation4], %s2408
        %s2410 = sand.u32 %s370, 1
        %s2411 = smul.addr %s2410, 8
        %s2412 = scalar_lea.vmem [#allocation11], %s2411
        %s2413 = sand.u32 %s396, 1
        %s2414 = scalar_lea.sflag [#allocation13], %s2413
        %s2415 = sand.u32 %s396, 1
        %s2416 = smul.addr %s2415, 8
        %s2417 = scalar_lea.vmem [#allocation12], %s2416
        // Predicated region
        $region97: #{tpu_custom_call.1} parent=75 // pred_check
          %p2418 = pneg %p380
        $region98: #{tpu_custom_call.1} parent=75 // pred_check_branch
          %2420 = sbr.rel (%p2418) target = $region100
        $region99: #{tpu_custom_call.1} parent=75 // pred_region
          %s2422 = ssub.s32 128, 128
          %2423 = vsyncadd %s2409, %s2422
          %s2424 = smul.addr %s38, 128
          %s2425 = scalar_lea.hbm %s14, %s2424
          %s2427 = sshll.u32 %s2412, 4
          %s2428 = int_to_ptr.vmem [resolvable:$true] %s2427
          %2430 = dma.vmem_to_hbm [thread:$0]  %s2428, 128, %s2425, %s2409
        $region100: #{tpu_custom_call.1} parent=75 // pred_fallthru
          _
        // Predicated region
        $region101: #{tpu_custom_call.1} parent=75 // pred_check
          %p2431 = pneg %p406
        $region102: #{tpu_custom_call.1} parent=75 // pred_check_branch
          %2433 = sbr.rel (%p2431) target = $region104
        $region103: #{tpu_custom_call.1} parent=75 // pred_region
          %s2435 = ssub.s32 128, 128
          %2436 = vsyncadd %s2414, %s2435
          %s2437 = smul.addr %s38, 128
          %s2438 = scalar_lea.hbm %s15, %s2437
          %s2440 = sshll.u32 %s2417, 4
          %s2441 = int_to_ptr.vmem [resolvable:$true] %s2440
          %2443 = dma.vmem_to_hbm [thread:$0]  %s2441, 128, %s2438, %s2414
        $region104: #{tpu_custom_call.1} parent=75 // pred_fallthru
          _
      $region76: #{tpu_custom_call.1} parent=5 // pred_fallthru
        _
      %p2444 = scmp.le.s32.totalorder 2, %s33
      // Predicated region
      $region105: #{tpu_custom_call.1} parent=5 // pred_check
        %p2445 = pneg %p2444
      $region106: #{tpu_custom_call.1} parent=5 // pred_check_branch
        %2447 = sbr.rel (%p2445) target = $region108
      $region107: #{tpu_custom_call.1} parent=5 // pred_region
        %s2448 = ssub.s32 %s33, 2
        // Predicated region
        $region109: #{tpu_custom_call.1} parent=107 // pred_check
          %p2449 = pneg %p386
        $region110: #{tpu_custom_call.1} parent=107 // pred_check_branch
          %2451 = sbr.rel (%p2449) target = $region112
        $region111: #{tpu_custom_call.1} parent=107 // pred_region
          %s2452 = sand.u32 %s371, 1
          %s2453 = scalar_lea.sflag [#allocation4], %s2452
          %s2454 = sand.u32 %s371, 1
          %s2455 = smul.addr %s2454, 8
          %s2456 = scalar_lea.vmem [#allocation11], %s2455
          %2457 = dma.done %s2453, 128
        $region112: #{tpu_custom_call.1} parent=107 // pred_fallthru
          _
        // Predicated region
        $region113: #{tpu_custom_call.1} parent=107 // pred_check
          %p2458 = pneg %p412
        $region114: #{tpu_custom_call.1} parent=107 // pred_check_branch
          %2460 = sbr.rel (%p2458) target = $region116
        $region115: #{tpu_custom_call.1} parent=107 // pred_region
          %s2461 = sand.u32 %s397, 1
          %s2462 = scalar_lea.sflag [#allocation13], %s2461
          %s2463 = sand.u32 %s397, 1
          %s2464 = smul.addr %s2463, 8
          %s2465 = scalar_lea.vmem [#allocation12], %s2464
          %2466 = dma.done %s2462, 128
        $region116: #{tpu_custom_call.1} parent=107 // pred_fallthru
          _
      $region108: #{tpu_custom_call.1} parent=5 // pred_fallthru
        _
    $region6: #{tpu_custom_call.1} parent=1 // loop_footer
      %s37 = sadd.s32 1, %s33
    $region7: #{tpu_custom_call.1} parent=1 // loop_footer_branch
      %32 = sbr.rel target = $region3
    $region8: #{tpu_custom_call.1} parent=1 // loop_exit
      _
    %2467 = vsyncpa [#allocation3], 1
    %s2468 = scalar_lea.sflag [#allocation3], 1
    %2469 = vsyncpa %s2468, 1
    %2470 = vsyncpa [#allocation6], 1
    %2471 = vsyncpa [#allocation9], 1
    %2472 = vsyncpa [#allocation4], 1
    %s2473 = scalar_lea.sflag [#allocation4], 1
    %2474 = vsyncpa %s2473, 1
    %2475 = vsyncpa [#allocation13], 1
    %s2476 = scalar_lea.sflag [#allocation13], 1
    %2477 = vsyncpa %s2476, 1

</llo_original>
